<compile_context>
chip_gen: v7x
topology: tpu7x:2x2x1
jax: 0.10.0
libtpu: 0.0.40
codegen_flags: <defaults>
</compile_context>

<pallas_src>
import jax
import jax.numpy as jnp
import numpy as np
from jax import lax
from jax.experimental import pallas as pl
from jax.experimental.pallas import tpu as pltpu


# ------------------------------- fused kernel -------------------------------

def _mnist_fused_kernel(x_ref, w1_ref, b1_ref, w2_ref, b2_ref, w3_ref, b3_ref,
                        s1_ref, s2_ref, s3_ref, wfc_ref, bfc_ref, o_ref):
    f32, bf16 = jnp.float32, jnp.bfloat16

    def conv3x3_relu(a, wp, w_ref, b_ref):
        # a: (Ci, wp*wp) zero-padded activation, spatial flattened on lanes.
        # Output column q corresponds to (h, w) with q = h*wp + w; columns with
        # w >= wp-2 are junk and are never selected downstream.
        h_out = wp - 2
        w_out = wp - 2
        span = (h_out - 1) * wp + w_out
        taps = [a[:, (dh * wp + dw):(dh * wp + dw) + span]
                for dh in range(3) for dw in range(3)]
        patches = jnp.concatenate(taps, axis=0).astype(bf16)          # (9*Ci, span)
        y = jnp.dot(w_ref[...], patches, preferred_element_type=f32) + b_ref[...]
        return jnp.maximum(y, 0.0), span                              # (Co, span) f32

    def pool2x2_scatter(y, wp, span, s_ref):
        # 2x2 stride-2 max pool of the conv map, then scatter the pooled values
        # into the next stage's zero-padded grid via a constant 0/1 matmul.
        m = jnp.maximum(jnp.maximum(y[:, 0:span - wp - 1], y[:, 1:span - wp]),
                        jnp.maximum(y[:, wp:span - 1], y[:, wp + 1:span]))
        return jnp.dot(m.astype(bf16), s_ref[...], preferred_element_type=f32)

    x1 = x_ref[0]                                                     # (1, 900) f32

    y1, sp1 = conv3x3_relu(x1, 30, w1_ref, b1_ref)                    # (10, 838)
    x2 = pool2x2_scatter(y1, 30, sp1, s1_ref)                         # (10, 256)

    y2, sp2 = conv3x3_relu(x2, 16, w2_ref, b2_ref)                    # (16, 222)
    x3 = pool2x2_scatter(y2, 16, sp2, s2_ref)                         # (16, 81)

    y3, _ = conv3x3_relu(x3, 9, w3_ref, b3_ref)                       # (32, 61)

    # MaxPool2d(2, 2, padding=1): four corner-gather matmuls + elementwise max.
    # Valid only because y3 is post-ReLU (>= 0), so zero columns == -inf pad.
    t = jnp.dot(y3.astype(bf16), s3_ref[...], preferred_element_type=f32)  # (32, 64)
    pooled = jnp.maximum(jnp.maximum(t[:, 0:16], t[:, 16:32]),
                         jnp.maximum(t[:, 32:48], t[:, 48:64]))       # (32, 16)

    # Collapsed fc_1 @ fc_2 (no activation between them in the reference).
    col = jnp.concatenate([pooled[:, m:m + 1] for m in range(16)], axis=0)  # (512, 1)
    out = jnp.dot(wfc_ref[...], col.astype(bf16), preferred_element_type=f32)
    o_ref[0] = out + bfc_ref[...]                                     # (10, 1)


# ------------------------- host-side parameter prep -------------------------

def _pool_scatter_matrix(wp, h, w, wp2):
    """0/1 matrix mapping the 2x2/2-pooled conv map (row-major, padded width wp)
    into the next stage's zero-padded (wp2 x wp2) grid, flattened on lanes."""
    span = (h - 1) * wp + w
    rows = span - wp - 1
    s = np.zeros((rows, wp2 * wp2), np.float32)
    for ho in range(h // 2):
        for wo in range(w // 2):
            s[2 * ho * wp + 2 * wo, (ho + 1) * wp2 + (wo + 1)] = 1.0
    return s


def _pool_last_matrix():
    """MaxPool2d(2,2,padding=1) on the 7x7 conv3 map -> 4x4, expressed as four
    (61,16) corner-gather matrices packed into (61,64). Out-of-bounds corners
    become all-zero columns (== -inf padding, since the input is post-ReLU)."""
    s = np.zeros((61, 64), np.float32)
    for i in range(2):
        for j in range(2):
            for ho in range(4):
                for wo in range(4):
                    hh, ww = 2 * ho - 1 + i, 2 * wo - 1 + j
                    if 0 <= hh < 7 and 0 <= ww < 7:
                        s[hh * 9 + ww, (2 * i + j) * 16 + ho * 4 + wo] = 1.0
    return s


def prepare_params(params):
    """One-time prep, hoisted out of the jitted forward: conv weights in
    (Co, 9*Ci) bf16 matmul form, fc_1·fc_2 collapsed into one (10,512) bf16
    matrix, pooling scatter/gather matrices built as constants."""
    def conv_mat(w):
        co, ci = w.shape[0], w.shape[1]
        return jnp.transpose(w, (0, 2, 3, 1)).reshape(co, 9 * ci).astype(jnp.bfloat16)

    w12 = (params["fc2_w"] @ params["fc1_w"]).T                       # (512, 10) f32
    wfc = jnp.transpose(w12.reshape(32, 16, 10), (2, 1, 0)).reshape(10, 512)
    bfc = params["fc1_b"] @ params["fc2_w"].T + params["fc2_b"]       # (10,)

    return {
        "w1": conv_mat(params["conv1_w"]), "b1": params["conv1_b"].reshape(10, 1),
        "w2": conv_mat(params["conv2_w"]), "b2": params["conv2_b"].reshape(16, 1),
        "w3": conv_mat(params["conv3_w"]), "b3": params["conv3_b"].reshape(32, 1),
        "s1": jnp.asarray(_pool_scatter_matrix(30, 28, 28, 16), jnp.bfloat16),
        "s2": jnp.asarray(_pool_scatter_matrix(16, 14, 14, 9), jnp.bfloat16),
        "s3": jnp.asarray(_pool_last_matrix(), jnp.bfloat16),
        "wfc": wfc.astype(jnp.bfloat16),
        "bfc": bfc.reshape(10, 1).astype(jnp.float32),
    }


# --------------------------------- forward ----------------------------------

def _const_spec(a):
    nd = a.ndim
    return pl.BlockSpec(a.shape, lambda b, _n=nd: (0,) * _n)


def mnist_net_forward(x_nchw, prep):
    """x_nchw: (B, 1, 28, 28) float32; prep: output of prepare_params()."""
    B = x_nchw.shape[0]
    x = x_nchw.astype(jnp.float32).reshape(B, 28, 28)
    xp = jnp.pad(x, ((0, 0), (1, 1), (1, 1))).reshape(B, 1, 30 * 30)  # (B, 1, 900)

    names = ("w1", "b1", "w2", "b2", "w3", "b3", "s1", "s2", "s3", "wfc", "bfc")
    out = pl.pallas_call(
        _mnist_fused_kernel,
        out_shape=jax.ShapeDtypeStruct((B, 10, 1), jnp.float32),
        grid=(B,),
        in_specs=[pl.BlockSpec((1, 1, 900), lambda b: (b, 0, 0))]
                 + [_const_spec(prep[n]) for n in names],
        out_specs=pl.BlockSpec((1, 10, 1), lambda b: (b, 0, 0)),
        compiler_params=pltpu.CompilerParams(
            dimension_semantics=("parallel",)),   # shard batch across TCs on v7x
    )(xp, *[prep[n] for n in names])
    return out.reshape(B, 10)


# ---------------------------- params / reference ----------------------------

def init_params(key):
    """Deterministic init mimicking PyTorch defaults: U(-1/sqrt(fan_in), 1/sqrt(fan_in))."""
    def uinit(k, shape, fan_in):
        bound = 1.0 / (fan_in ** 0.5)
        return jax.random.uniform(k, shape, jnp.float32, -bound, bound)
    ks = jax.random.split(key, 10)
    return {
        "conv1_w": uinit(ks[0], (10, 1, 3, 3), 1 * 9),
        "conv1_b": uinit(ks[1], (10,), 1 * 9),
        "conv2_w": uinit(ks[2], (16, 10, 3, 3), 10 * 9),
        "conv2_b": uinit(ks[3], (16,), 10 * 9),
        "conv3_w": uinit(ks[4], (32, 16, 3, 3), 16 * 9),
        "conv3_b": uinit(ks[5], (32,), 16 * 9),
        "fc1_w": uinit(ks[6], (120, 32 * 4 * 4), 32 * 4 * 4),
        "fc1_b": uinit(ks[7], (120,), 32 * 4 * 4),
        "fc2_w": uinit(ks[8], (10, 120), 120),
        "fc2_b": uinit(ks[9], (10,), 120),
    }


def _reference_forward(x_nchw, params):
    """Pure-JAX (XLA, f32) reference matching the PyTorch forward semantics."""
    def conv(x, w, b):
        y = lax.conv_general_dilated(x, w, (1, 1), ((1, 1), (1, 1)),
                                     dimension_numbers=("NCHW", "OIHW", "NCHW"))
        return y + b.reshape(1, -1, 1, 1)

    def pool(x, pad):
        return lax.reduce_window(x, -jnp.inf, lax.max, (1, 1, 2, 2), (1, 1, 2, 2),
                                 ((0, 0), (0, 0), (pad, pad), (pad, pad)))

    a = pool(jnp.maximum(conv(x_nchw, params["conv1_w"], params["conv1_b"]), 0.0), 0)
    a = pool(jnp.maximum(conv(a, params["conv2_w"], params["conv2_b"]), 0.0), 0)
    a = pool(jnp.maximum(conv(a, params["conv3_w"], params["conv3_b"]), 0.0), 1)
    a = a.reshape(a.shape[0], -1)                    # NCHW flatten == (c, h, w) order
    a = a @ params["fc1_w"].T + params["fc1_b"]
    return a @ params["fc2_w"].T + params["fc2_b"]


# ----------------------------------- main ------------------------------------

if __name__ == "__main__":
    key = jax.random.PRNGKey(0)
    pkey, xkey = jax.random.split(key)
    params = init_params(pkey)
    prep = prepare_params(params)            # weight prep done once, outside jit

    # MNIST-shaped input: batch=2, NCHW (as in the PyTorch module).
    x = jax.random.normal(xkey, (2, 1, 28, 28), jnp.float32)

    fwd = jax.jit(mnist_net_forward)
    out = jax.block_until_ready(fwd(x, prep))

    ref = _reference_forward(x, params)
    assert out.shape == (2, 10), out.shape
    max_err = float(jnp.max(jnp.abs(out - ref)))
    # bf16 MXU operands -> compare against the f32 XLA reference with a bf16-level tolerance.
    assert jnp.allclose(out, ref, atol=5e-2, rtol=5e-2), max_err

    print("KERNEL_OK")
</pallas_src>

<mosaic_0001>
module attributes {stable_mosaic.version = 11 : i64} {
  func.func @_mnist_fused_kernel(%arg0: i32, %arg1: memref<1x1x900xf32, #tpu.memory_space<vmem>>, %arg2: memref<10x9xbf16, #tpu.memory_space<vmem>>, %arg3: memref<10x1xf32, #tpu.memory_space<vmem>>, %arg4: memref<16x90xbf16, #tpu.memory_space<vmem>>, %arg5: memref<16x1xf32, #tpu.memory_space<vmem>>, %arg6: memref<32x144xbf16, #tpu.memory_space<vmem>>, %arg7: memref<32x1xf32, #tpu.memory_space<vmem>>, %arg8: memref<807x256xbf16, #tpu.memory_space<vmem>>, %arg9: memref<205x81xbf16, #tpu.memory_space<vmem>>, %arg10: memref<61x64xbf16, #tpu.memory_space<vmem>>, %arg11: memref<10x512xbf16, #tpu.memory_space<vmem>>, %arg12: memref<10x1xf32, #tpu.memory_space<vmem>>, %arg13: memref<1x10x1xf32, #tpu.memory_space<vmem>>) attributes {dimension_semantics = [#tpu.dimension_semantics<parallel>], iteration_bounds = array<i64: 2>, scalar_prefetch = 0 : i64, scratch_operands = 0 : i64, tpu.core_type = #tpu.core_type<tc>, window_params = [{transform_indices = @transform_0, window_bounds = array<i64: 1, 1, 900>}, {pipeline_mode = #tpu.pipeline_mode<synchronous>, transform_indices = @transform_1, window_bounds = array<i64: 10, 9>}, {pipeline_mode = #tpu.pipeline_mode<synchronous>, transform_indices = @transform_2, window_bounds = array<i64: 10, 1>}, {pipeline_mode = #tpu.pipeline_mode<synchronous>, transform_indices = @transform_3, window_bounds = array<i64: 16, 90>}, {pipeline_mode = #tpu.pipeline_mode<synchronous>, transform_indices = @transform_4, window_bounds = array<i64: 16, 1>}, {pipeline_mode = #tpu.pipeline_mode<synchronous>, transform_indices = @transform_5, window_bounds = array<i64: 32, 144>}, {pipeline_mode = #tpu.pipeline_mode<synchronous>, transform_indices = @transform_6, window_bounds = array<i64: 32, 1>}, {pipeline_mode = #tpu.pipeline_mode<synchronous>, transform_indices = @transform_7, window_bounds = array<i64: 807, 256>}, {pipeline_mode = #tpu.pipeline_mode<synchronous>, transform_indices = @transform_8, window_bounds = array<i64: 205, 81>}, {pipeline_mode = #tpu.pipeline_mode<synchronous>, transform_indices = @transform_9, window_bounds = array<i64: 61, 64>}, {pipeline_mode = #tpu.pipeline_mode<synchronous>, transform_indices = @transform_10, window_bounds = array<i64: 10, 512>}, {pipeline_mode = #tpu.pipeline_mode<synchronous>, transform_indices = @transform_11, window_bounds = array<i64: 10, 1>}, {transform_indices = @transform_12, window_bounds = array<i64: 1, 10, 1>}]} {
    %c0 = arith.constant 0 : index
    %c0_0 = arith.constant 0 : index
    %c0_1 = arith.constant 0 : index
    %0 = vector.load %arg1[%c0, %c0_0, %c0_1] : memref<1x1x900xf32, #tpu.memory_space<vmem>>, vector<1x1x900xf32>
    %1 = vector.shape_cast %0 : vector<1x1x900xf32> to vector<1x900xf32>
    %2 = vector.extract_strided_slice %1 {offsets = [0, 0], sizes = [1, 838], strides = [1, 1]} : vector<1x900xf32> to vector<1x838xf32>
    %3 = vector.extract_strided_slice %1 {offsets = [0, 1], sizes = [1, 838], strides = [1, 1]} : vector<1x900xf32> to vector<1x838xf32>
    %4 = vector.extract_strided_slice %1 {offsets = [0, 2], sizes = [1, 838], strides = [1, 1]} : vector<1x900xf32> to vector<1x838xf32>
    %5 = vector.extract_strided_slice %1 {offsets = [0, 30], sizes = [1, 838], strides = [1, 1]} : vector<1x900xf32> to vector<1x838xf32>
    %6 = vector.extract_strided_slice %1 {offsets = [0, 31], sizes = [1, 838], strides = [1, 1]} : vector<1x900xf32> to vector<1x838xf32>
    %7 = vector.extract_strided_slice %1 {offsets = [0, 32], sizes = [1, 838], strides = [1, 1]} : vector<1x900xf32> to vector<1x838xf32>
    %8 = vector.extract_strided_slice %1 {offsets = [0, 60], sizes = [1, 838], strides = [1, 1]} : vector<1x900xf32> to vector<1x838xf32>
    %9 = vector.extract_strided_slice %1 {offsets = [0, 61], sizes = [1, 838], strides = [1, 1]} : vector<1x900xf32> to vector<1x838xf32>
    %10 = vector.extract_strided_slice %1 {offsets = [0, 62], sizes = [1, 838], strides = [1, 1]} : vector<1x900xf32> to vector<1x838xf32>
    %11 = tpu.concatenate %2, %3, %4, %5, %6, %7, %8, %9, %10 in 0 : vector<1x838xf32>, vector<1x838xf32>, vector<1x838xf32>, vector<1x838xf32>, vector<1x838xf32>, vector<1x838xf32>, vector<1x838xf32>, vector<1x838xf32>, vector<1x838xf32> -> vector<9x838xf32>
    %12 = arith.truncf %11 : vector<9x838xf32> to vector<9x838xbf16>
    %c0_2 = arith.constant 0 : index
    %c0_3 = arith.constant 0 : index
    %13 = vector.load %arg2[%c0_2, %c0_3] : memref<10x9xbf16, #tpu.memory_space<vmem>>, vector<10x9xbf16>
    %cst = arith.constant dense<0.000000e+00> : vector<10x838xf32>
    %14 = tpu.matmul %13, %12, %cst {dimension_numbers = #tpu.dot_dimension_numbers<[1], [0], [0], [1], [0, 0, 1, 1], [], []>} : vector<10x9xbf16>, vector<9x838xbf16>, vector<10x838xf32> -> vector<10x838xf32>
    %c0_4 = arith.constant 0 : index
    %c0_5 = arith.constant 0 : index
    %15 = vector.load %arg3[%c0_4, %c0_5] : memref<10x1xf32, #tpu.memory_space<vmem>>, vector<10x1xf32>
    %16 = vector.broadcast %15 : vector<10x1xf32> to vector<10x838xf32>
    %17 = arith.addf %14, %16 : vector<10x838xf32>
    %cst_6 = arith.constant 0.000000e+00 : f32
    %18 = vector.broadcast %cst_6 : f32 to vector<10x838xf32>
    %19 = arith.maximumf %17, %18 : vector<10x838xf32>
    %20 = vector.extract_strided_slice %19 {offsets = [0, 0], sizes = [10, 807], strides = [1, 1]} : vector<10x838xf32> to vector<10x807xf32>
    %21 = vector.extract_strided_slice %19 {offsets = [0, 1], sizes = [10, 807], strides = [1, 1]} : vector<10x838xf32> to vector<10x807xf32>
    %22 = arith.maximumf %20, %21 : vector<10x807xf32>
    %23 = vector.extract_strided_slice %19 {offsets = [0, 30], sizes = [10, 807], strides = [1, 1]} : vector<10x838xf32> to vector<10x807xf32>
    %24 = vector.extract_strided_slice %19 {offsets = [0, 31], sizes = [10, 807], strides = [1, 1]} : vector<10x838xf32> to vector<10x807xf32>
    %25 = arith.maximumf %23, %24 : vector<10x807xf32>
    %26 = arith.maximumf %22, %25 : vector<10x807xf32>
    %27 = arith.truncf %26 : vector<10x807xf32> to vector<10x807xbf16>
    %c0_7 = arith.constant 0 : index
    %c0_8 = arith.constant 0 : index
    %28 = vector.load %arg8[%c0_7, %c0_8] : memref<807x256xbf16, #tpu.memory_space<vmem>>, vector<807x256xbf16>
    %cst_9 = arith.constant dense<0.000000e+00> : vector<10x256xf32>
    %29 = tpu.matmul %27, %28, %cst_9 {dimension_numbers = #tpu.dot_dimension_numbers<[1], [0], [0], [1], [0, 0, 1, 1], [], []>} : vector<10x807xbf16>, vector<807x256xbf16>, vector<10x256xf32> -> vector<10x256xf32>
    %30 = vector.extract_strided_slice %29 {offsets = [0, 0], sizes = [10, 222], strides = [1, 1]} : vector<10x256xf32> to vector<10x222xf32>
    %31 = vector.extract_strided_slice %29 {offsets = [0, 1], sizes = [10, 222], strides = [1, 1]} : vector<10x256xf32> to vector<10x222xf32>
    %32 = vector.extract_strided_slice %29 {offsets = [0, 2], sizes = [10, 222], strides = [1, 1]} : vector<10x256xf32> to vector<10x222xf32>
    %33 = vector.extract_strided_slice %29 {offsets = [0, 16], sizes = [10, 222], strides = [1, 1]} : vector<10x256xf32> to vector<10x222xf32>
    %34 = vector.extract_strided_slice %29 {offsets = [0, 17], sizes = [10, 222], strides = [1, 1]} : vector<10x256xf32> to vector<10x222xf32>
    %35 = vector.extract_strided_slice %29 {offsets = [0, 18], sizes = [10, 222], strides = [1, 1]} : vector<10x256xf32> to vector<10x222xf32>
    %36 = vector.extract_strided_slice %29 {offsets = [0, 32], sizes = [10, 222], strides = [1, 1]} : vector<10x256xf32> to vector<10x222xf32>
    %37 = vector.extract_strided_slice %29 {offsets = [0, 33], sizes = [10, 222], strides = [1, 1]} : vector<10x256xf32> to vector<10x222xf32>
    %38 = vector.extract_strided_slice %29 {offsets = [0, 34], sizes = [10, 222], strides = [1, 1]} : vector<10x256xf32> to vector<10x222xf32>
    %39 = tpu.concatenate %30, %31, %32, %33, %34, %35, %36, %37, %38 in 0 : vector<10x222xf32>, vector<10x222xf32>, vector<10x222xf32>, vector<10x222xf32>, vector<10x222xf32>, vector<10x222xf32>, vector<10x222xf32>, vector<10x222xf32>, vector<10x222xf32> -> vector<90x222xf32>
    %40 = arith.truncf %39 : vector<90x222xf32> to vector<90x222xbf16>
    %c0_10 = arith.constant 0 : index
    %c0_11 = arith.constant 0 : index
    %41 = vector.load %arg4[%c0_10, %c0_11] : memref<16x90xbf16, #tpu.memory_space<vmem>>, vector<16x90xbf16>
    %cst_12 = arith.constant dense<0.000000e+00> : vector<16x222xf32>
    %42 = tpu.matmul %41, %40, %cst_12 {dimension_numbers = #tpu.dot_dimension_numbers<[1], [0], [0], [1], [0, 0, 1, 1], [], []>} : vector<16x90xbf16>, vector<90x222xbf16>, vector<16x222xf32> -> vector<16x222xf32>
    %c0_13 = arith.constant 0 : index
    %c0_14 = arith.constant 0 : index
    %43 = vector.load %arg5[%c0_13, %c0_14] : memref<16x1xf32, #tpu.memory_space<vmem>>, vector<16x1xf32>
    %44 = vector.broadcast %43 : vector<16x1xf32> to vector<16x222xf32>
    %45 = arith.addf %42, %44 : vector<16x222xf32>
    %cst_15 = arith.constant 0.000000e+00 : f32
    %46 = vector.broadcast %cst_15 : f32 to vector<16x222xf32>
    %47 = arith.maximumf %45, %46 : vector<16x222xf32>
    %48 = vector.extract_strided_slice %47 {offsets = [0, 0], sizes = [16, 205], strides = [1, 1]} : vector<16x222xf32> to vector<16x205xf32>
    %49 = vector.extract_strided_slice %47 {offsets = [0, 1], sizes = [16, 205], strides = [1, 1]} : vector<16x222xf32> to vector<16x205xf32>
    %50 = arith.maximumf %48, %49 : vector<16x205xf32>
    %51 = vector.extract_strided_slice %47 {offsets = [0, 16], sizes = [16, 205], strides = [1, 1]} : vector<16x222xf32> to vector<16x205xf32>
    %52 = vector.extract_strided_slice %47 {offsets = [0, 17], sizes = [16, 205], strides = [1, 1]} : vector<16x222xf32> to vector<16x205xf32>
    %53 = arith.maximumf %51, %52 : vector<16x205xf32>
    %54 = arith.maximumf %50, %53 : vector<16x205xf32>
    %55 = arith.truncf %54 : vector<16x205xf32> to vector<16x205xbf16>
    %c0_16 = arith.constant 0 : index
    %c0_17 = arith.constant 0 : index
    %56 = vector.load %arg9[%c0_16, %c0_17] : memref<205x81xbf16, #tpu.memory_space<vmem>>, vector<205x81xbf16>
    %cst_18 = arith.constant dense<0.000000e+00> : vector<16x81xf32>
    %57 = tpu.matmul %55, %56, %cst_18 {dimension_numbers = #tpu.dot_dimension_numbers<[1], [0], [0], [1], [0, 0, 1, 1], [], []>} : vector<16x205xbf16>, vector<205x81xbf16>, vector<16x81xf32> -> vector<16x81xf32>
    %58 = vector.extract_strided_slice %57 {offsets = [0, 0], sizes = [16, 61], strides = [1, 1]} : vector<16x81xf32> to vector<16x61xf32>
    %59 = vector.extract_strided_slice %57 {offsets = [0, 1], sizes = [16, 61], strides = [1, 1]} : vector<16x81xf32> to vector<16x61xf32>
    %60 = vector.extract_strided_slice %57 {offsets = [0, 2], sizes = [16, 61], strides = [1, 1]} : vector<16x81xf32> to vector<16x61xf32>
    %61 = vector.extract_strided_slice %57 {offsets = [0, 9], sizes = [16, 61], strides = [1, 1]} : vector<16x81xf32> to vector<16x61xf32>
    %62 = vector.extract_strided_slice %57 {offsets = [0, 10], sizes = [16, 61], strides = [1, 1]} : vector<16x81xf32> to vector<16x61xf32>
    %63 = vector.extract_strided_slice %57 {offsets = [0, 11], sizes = [16, 61], strides = [1, 1]} : vector<16x81xf32> to vector<16x61xf32>
    %64 = vector.extract_strided_slice %57 {offsets = [0, 18], sizes = [16, 61], strides = [1, 1]} : vector<16x81xf32> to vector<16x61xf32>
    %65 = vector.extract_strided_slice %57 {offsets = [0, 19], sizes = [16, 61], strides = [1, 1]} : vector<16x81xf32> to vector<16x61xf32>
    %66 = vector.extract_strided_slice %57 {offsets = [0, 20], sizes = [16, 61], strides = [1, 1]} : vector<16x81xf32> to vector<16x61xf32>
    %67 = tpu.concatenate %58, %59, %60, %61, %62, %63, %64, %65, %66 in 0 : vector<16x61xf32>, vector<16x61xf32>, vector<16x61xf32>, vector<16x61xf32>, vector<16x61xf32>, vector<16x61xf32>, vector<16x61xf32>, vector<16x61xf32>, vector<16x61xf32> -> vector<144x61xf32>
    %68 = arith.truncf %67 : vector<144x61xf32> to vector<144x61xbf16>
    %c0_19 = arith.constant 0 : index
    %c0_20 = arith.constant 0 : index
    %69 = vector.load %arg6[%c0_19, %c0_20] : memref<32x144xbf16, #tpu.memory_space<vmem>>, vector<32x144xbf16>
    %cst_21 = arith.constant dense<0.000000e+00> : vector<32x61xf32>
    %70 = tpu.matmul %69, %68, %cst_21 {dimension_numbers = #tpu.dot_dimension_numbers<[1], [0], [0], [1], [0, 0, 1, 1], [], []>} : vector<32x144xbf16>, vector<144x61xbf16>, vector<32x61xf32> -> vector<32x61xf32>
    %c0_22 = arith.constant 0 : index
    %c0_23 = arith.constant 0 : index
    %71 = vector.load %arg7[%c0_22, %c0_23] : memref<32x1xf32, #tpu.memory_space<vmem>>, vector<32x1xf32>
    %72 = vector.broadcast %71 : vector<32x1xf32> to vector<32x61xf32>
    %73 = arith.addf %70, %72 : vector<32x61xf32>
    %cst_24 = arith.constant 0.000000e+00 : f32
    %74 = vector.broadcast %cst_24 : f32 to vector<32x61xf32>
    %75 = arith.maximumf %73, %74 : vector<32x61xf32>
    %76 = arith.truncf %75 : vector<32x61xf32> to vector<32x61xbf16>
    %c0_25 = arith.constant 0 : index
    %c0_26 = arith.constant 0 : index
    %77 = vector.load %arg10[%c0_25, %c0_26] : memref<61x64xbf16, #tpu.memory_space<vmem>>, vector<61x64xbf16>
    %cst_27 = arith.constant dense<0.000000e+00> : vector<32x64xf32>
    %78 = tpu.matmul %76, %77, %cst_27 {dimension_numbers = #tpu.dot_dimension_numbers<[1], [0], [0], [1], [0, 0, 1, 1], [], []>} : vector<32x61xbf16>, vector<61x64xbf16>, vector<32x64xf32> -> vector<32x64xf32>
    %79 = vector.extract_strided_slice %78 {offsets = [0, 0], sizes = [32, 16], strides = [1, 1]} : vector<32x64xf32> to vector<32x16xf32>
    %80 = vector.extract_strided_slice %78 {offsets = [0, 16], sizes = [32, 16], strides = [1, 1]} : vector<32x64xf32> to vector<32x16xf32>
    %81 = arith.maximumf %79, %80 : vector<32x16xf32>
    %82 = vector.extract_strided_slice %78 {offsets = [0, 32], sizes = [32, 16], strides = [1, 1]} : vector<32x64xf32> to vector<32x16xf32>
    %83 = vector.extract_strided_slice %78 {offsets = [0, 48], sizes = [32, 16], strides = [1, 1]} : vector<32x64xf32> to vector<32x16xf32>
    %84 = arith.maximumf %82, %83 : vector<32x16xf32>
    %85 = arith.maximumf %81, %84 : vector<32x16xf32>
    %86 = vector.extract_strided_slice %85 {offsets = [0, 0], sizes = [32, 1], strides = [1, 1]} : vector<32x16xf32> to vector<32x1xf32>
    %87 = vector.extract_strided_slice %85 {offsets = [0, 1], sizes = [32, 1], strides = [1, 1]} : vector<32x16xf32> to vector<32x1xf32>
    %88 = vector.extract_strided_slice %85 {offsets = [0, 2], sizes = [32, 1], strides = [1, 1]} : vector<32x16xf32> to vector<32x1xf32>
    %89 = vector.extract_strided_slice %85 {offsets = [0, 3], sizes = [32, 1], strides = [1, 1]} : vector<32x16xf32> to vector<32x1xf32>
    %90 = vector.extract_strided_slice %85 {offsets = [0, 4], sizes = [32, 1], strides = [1, 1]} : vector<32x16xf32> to vector<32x1xf32>
    %91 = vector.extract_strided_slice %85 {offsets = [0, 5], sizes = [32, 1], strides = [1, 1]} : vector<32x16xf32> to vector<32x1xf32>
    %92 = vector.extract_strided_slice %85 {offsets = [0, 6], sizes = [32, 1], strides = [1, 1]} : vector<32x16xf32> to vector<32x1xf32>
    %93 = vector.extract_strided_slice %85 {offsets = [0, 7], sizes = [32, 1], strides = [1, 1]} : vector<32x16xf32> to vector<32x1xf32>
    %94 = vector.extract_strided_slice %85 {offsets = [0, 8], sizes = [32, 1], strides = [1, 1]} : vector<32x16xf32> to vector<32x1xf32>
    %95 = vector.extract_strided_slice %85 {offsets = [0, 9], sizes = [32, 1], strides = [1, 1]} : vector<32x16xf32> to vector<32x1xf32>
    %96 = vector.extract_strided_slice %85 {offsets = [0, 10], sizes = [32, 1], strides = [1, 1]} : vector<32x16xf32> to vector<32x1xf32>
    %97 = vector.extract_strided_slice %85 {offsets = [0, 11], sizes = [32, 1], strides = [1, 1]} : vector<32x16xf32> to vector<32x1xf32>
    %98 = vector.extract_strided_slice %85 {offsets = [0, 12], sizes = [32, 1], strides = [1, 1]} : vector<32x16xf32> to vector<32x1xf32>
    %99 = vector.extract_strided_slice %85 {offsets = [0, 13], sizes = [32, 1], strides = [1, 1]} : vector<32x16xf32> to vector<32x1xf32>
    %100 = vector.extract_strided_slice %85 {offsets = [0, 14], sizes = [32, 1], strides = [1, 1]} : vector<32x16xf32> to vector<32x1xf32>
    %101 = vector.extract_strided_slice %85 {offsets = [0, 15], sizes = [32, 1], strides = [1, 1]} : vector<32x16xf32> to vector<32x1xf32>
    %102 = tpu.concatenate %86, %87, %88, %89, %90, %91, %92, %93, %94, %95, %96, %97, %98, %99, %100, %101 in 0 : vector<32x1xf32>, vector<32x1xf32>, vector<32x1xf32>, vector<32x1xf32>, vector<32x1xf32>, vector<32x1xf32>, vector<32x1xf32>, vector<32x1xf32>, vector<32x1xf32>, vector<32x1xf32>, vector<32x1xf32>, vector<32x1xf32>, vector<32x1xf32>, vector<32x1xf32>, vector<32x1xf32>, vector<32x1xf32> -> vector<512x1xf32>
    %c0_28 = arith.constant 0 : index
    %c0_29 = arith.constant 0 : index
    %103 = vector.load %arg11[%c0_28, %c0_29] : memref<10x512xbf16, #tpu.memory_space<vmem>>, vector<10x512xbf16>
    %104 = arith.truncf %102 : vector<512x1xf32> to vector<512x1xbf16>
    %cst_30 = arith.constant dense<0.000000e+00> : vector<10x1xf32>
    %105 = tpu.matmul %103, %104, %cst_30 {dimension_numbers = #tpu.dot_dimension_numbers<[1], [0], [0], [1], [0, 0, 1, 1], [], []>} : vector<10x512xbf16>, vector<512x1xbf16>, vector<10x1xf32> -> vector<10x1xf32>
    %c0_31 = arith.constant 0 : index
    %c0_32 = arith.constant 0 : index
    %106 = vector.load %arg12[%c0_31, %c0_32] : memref<10x1xf32, #tpu.memory_space<vmem>>, vector<10x1xf32>
    %107 = arith.addf %105, %106 : vector<10x1xf32>
    %c0_33 = arith.constant 0 : index
    %c0_34 = arith.constant 0 : index
    %c0_35 = arith.constant 0 : index
    %108 = vector.load %arg13[%c0_33, %c0_34, %c0_35] : memref<1x10x1xf32, #tpu.memory_space<vmem>>, vector<1x10x1xf32>
    %109 = vector.shape_cast %108 : vector<1x10x1xf32> to vector<10x1xf32>
    %110 = vector.shape_cast %107 : vector<10x1xf32> to vector<1x10x1xf32>
    tpu.vector_store %arg13[%c0_33, %c0_34, %c0_35], %110 {strides = array<i32>} : memref<1x10x1xf32, #tpu.memory_space<vmem>>, vector<1x10x1xf32>,
    return
  }
  func.func @transform_0(%arg0: i32) -> (i32, i32, i32) {
    %c0_i32 = arith.constant 0 : i32
    %c0_i32_0 = arith.constant 0 : i32
    %c0_i32_1 = arith.constant 0 : i32
    return %arg0, %c0_i32, %c0_i32_0 : i32, i32, i32
  }
  func.func @transform_1(%arg0: i32) -> (i32, i32) {
    %c0_i32 = arith.constant 0 : i32
    %c0_i32_0 = arith.constant 0 : i32
    %c0_i32_1 = arith.constant 0 : i32
    return %c0_i32, %c0_i32_0 : i32, i32
  }
  func.func @transform_2(%arg0: i32) -> (i32, i32) {
    %c0_i32 = arith.constant 0 : i32
    %c0_i32_0 = arith.constant 0 : i32
    %c0_i32_1 = arith.constant 0 : i32
    return %c0_i32, %c0_i32_0 : i32, i32
  }
  func.func @transform_3(%arg0: i32) -> (i32, i32) {
    %c0_i32 = arith.constant 0 : i32
    %c0_i32_0 = arith.constant 0 : i32
    %c0_i32_1 = arith.constant 0 : i32
    return %c0_i32, %c0_i32_0 : i32, i32
  }
  func.func @transform_4(%arg0: i32) -> (i32, i32) {
    %c0_i32 = arith.constant 0 : i32
    %c0_i32_0 = arith.constant 0 : i32
    %c0_i32_1 = arith.constant 0 : i32
    return %c0_i32, %c0_i32_0 : i32, i32
  }
  func.func @transform_5(%arg0: i32) -> (i32, i32) {
    %c0_i32 = arith.constant 0 : i32
    %c0_i32_0 = arith.constant 0 : i32
    %c0_i32_1 = arith.constant 0 : i32
    return %c0_i32, %c0_i32_0 : i32, i32
  }
  func.func @transform_6(%arg0: i32) -> (i32, i32) {
    %c0_i32 = arith.constant 0 : i32
    %c0_i32_0 = arith.constant 0 : i32
    %c0_i32_1 = arith.constant 0 : i32
    return %c0_i32, %c0_i32_0 : i32, i32
  }
  func.func @transform_7(%arg0: i32) -> (i32, i32) {
    %c0_i32 = arith.constant 0 : i32
    %c0_i32_0 = arith.constant 0 : i32
    %c0_i32_1 = arith.constant 0 : i32
    return %c0_i32, %c0_i32_0 : i32, i32
  }
  func.func @transform_8(%arg0: i32) -> (i32, i32) {
    %c0_i32 = arith.constant 0 : i32
    %c0_i32_0 = arith.constant 0 : i32
    %c0_i32_1 = arith.constant 0 : i32
    return %c0_i32, %c0_i32_0 : i32, i32
  }
  func.func @transform_9(%arg0: i32) -> (i32, i32) {
    %c0_i32 = arith.constant 0 : i32
    %c0_i32_0 = arith.constant 0 : i32
    %c0_i32_1 = arith.constant 0 : i32
    return %c0_i32, %c0_i32_0 : i32, i32
  }
  func.func @transform_10(%arg0: i32) -> (i32, i32) {
    %c0_i32 = arith.constant 0 : i32
    %c0_i32_0 = arith.constant 0 : i32
    %c0_i32_1 = arith.constant 0 : i32
    return %c0_i32, %c0_i32_0 : i32, i32
  }
  func.func @transform_11(%arg0: i32) -> (i32, i32) {
    %c0_i32 = arith.constant 0 : i32
    %c0_i32_0 = arith.constant 0 : i32
    %c0_i32_1 = arith.constant 0 : i32
    return %c0_i32, %c0_i32_0 : i32, i32
  }
  func.func @transform_12(%arg0: i32) -> (i32, i32, i32) {
    %c0_i32 = arith.constant 0 : i32
    %c0_i32_0 = arith.constant 0 : i32
    %c0_i32_1 = arith.constant 0 : i32
    return %arg0, %c0_i32, %c0_i32_0 : i32, i32, i32
  }
}

</mosaic_0001>

<llo_original>
// kernel: mnist_net_forward.1
$region0: #{mnist_net_forward.1}
  #allocation0 [shape = 'u32[]', space=smem, size = 0x4, offset = 0x4, fixed_abs, tag = 'smem constant byte address 0x4 - core index']
  #allocation1 [shape = 'u32[144,128]{1,0:T(1,128)}', space=vmem, size = 0x12000, scoped, tag = 'internal scratch']
  %s0 = inlined_call_operand.vmem [shape: f32[2,1,900], index: 0, kind: input, shape index: {}]
  %s1 = inlined_call_operand.vmem [shape: bf16[10,9], index: 1, kind: input, shape index: {}]
  %s2 = inlined_call_operand.vmem [shape: f32[10,1], index: 2, kind: input, shape index: {}]
  %s3 = inlined_call_operand.vmem [shape: bf16[16,90], index: 3, kind: input, shape index: {}]
  %s4 = inlined_call_operand.vmem [shape: f32[16,1], index: 4, kind: input, shape index: {}]
  %s5 = inlined_call_operand.vmem [shape: bf16[32,144], index: 5, kind: input, shape index: {}]
  %s6 = inlined_call_operand.vmem [shape: f32[32,1], index: 6, kind: input, shape index: {}]
  %s7 = inlined_call_operand.hbm [shape: bf16[807,256], index: 7, kind: input, shape index: {}]
  %s8 = inlined_call_operand.vmem [shape: bf16[205,81], index: 8, kind: input, shape index: {}]
  %s9 = inlined_call_operand.vmem [shape: bf16[61,64], index: 9, kind: input, shape index: {}]
  %s10 = inlined_call_operand.vmem [shape: bf16[10,512], index: 10, kind: input, shape index: {}]
  %s11 = inlined_call_operand.vmem [shape: f32[10,1], index: 11, kind: input, shape index: {}]
  %s12 = inlined_call_operand.vmem [shape: f32[2,10,1], index: 12, kind: output, shape index: {}]
  %s13 = sld [smem:[#allocation0]]
  $region85: #{mnist_net_forward.1} parent=0
    _
  %s15 = ssub.s32 1, %s13
  %s16 = scalar_select 0, %s15, %s13
  $region1: #{mnist_net_forward.1} parent=0
    #allocation2 [shape = 'u8[413696]{0}', space=vmem, size = 0x65000, scoped, tag = 'input window, operand 7, single buffered']
    #allocation3 [shape = 's32[2]{0}', space=sflag, size = 0x8, scoped, tag = 'scoped memory for mnist_net_forward.1']
    %17 = vsyncpa [#allocation3], 0
    loop: start=0, step=1, limit=4
    $region2: #{mnist_net_forward.1} parent=1 // loop_pre_header
      _
    $region3: #{mnist_net_forward.1} parent=1 // loop_header
      %s19 = sphi 0, %s23
      %p20 = scmp.ge.s32.totalorder %s19, 4
      %s29 = sphi 0, %s31
      %s32 = sphi 0, %s29
      %s33 = sphi 0, %s32
      %s49 = sphi 0, %s33
      %s53 = sphi 0, %s53
      %s55 = sphi 0, %s53
      %s56 = sphi 0, %s55
      %s70 = sphi 0, %s56
      %s74 = sphi 0, %s74
      %s76 = sphi 0, %s74
      %s77 = sphi 0, %s76
      %s91 = sphi 0, %s77
      %s95 = sphi 0, %s95
      %s97 = sphi 0, %s95
      %s98 = sphi 0, %s97
      %s112 = sphi 0, %s98
      %s116 = sphi 0, %s116
      %s118 = sphi 0, %s116
      %s119 = sphi 0, %s118
      %s133 = sphi 0, %s119
      %s137 = sphi 0, %s137
      %s139 = sphi 0, %s137
      %s140 = sphi 0, %s139
      %s154 = sphi 0, %s140
      %s158 = sphi 0, %s158
      %s160 = sphi 0, %s158
      %s161 = sphi 0, %s160
      %s175 = sphi 0, %s161
      %s179 = sphi 0, %s179
      %s181 = sphi 0, %s179
      %s182 = sphi 0, %s181
      %s196 = sphi 0, %s182
      %s200 = sphi 0, %s200
      %s202 = sphi 0, %s200
      %s203 = sphi 0, %s202
      %s217 = sphi 0, %s203
      %s221 = sphi 0, %s221
      %s223 = sphi 0, %s221
      %s224 = sphi 0, %s223
      %s238 = sphi 0, %s224
      %s242 = sphi 0, %s242
      %s244 = sphi 0, %s242
      %s245 = sphi 0, %s244
      %s259 = sphi 0, %s245
      %s263 = sphi 0, %s263
      %s265 = sphi 0, %s263
      %s266 = sphi 0, %s265
      %s280 = sphi 0, %s266
      %s286 = sphi 0, %s288
      %s289 = sphi 0, %s286
      %s290 = sphi 0, %s289
      %s306 = sphi 0, %s290
    $region4: #{mnist_net_forward.1} parent=1 // loop_header_branch
      %22 = sbr.rel (%p20) target = $region8
    $region5: #{mnist_net_forward.1} parent=1 // loop_body
      %s24 = ssub.s32 %s19, 1
      %s25 = ssub.s32 %s19, 2
      %s26 = sadd.s32 %s19, 1
      %s27 = ssub.s32 %s19, %s26
      %p28 = scmp.eq.s32.totalorder %s27, 0
      %s30 = sadd.s32 %s29, 1
      %s31 = scalar_select %p28, %s29, %s30
      %p34 = pneg %p28
      %p35 = scmp.eq.s32.totalorder %s19, 1
      %p36 = por %p34, %p35
      %p37 = scmp.ne.s32.totalorder %s29, %s32
      %p38 = scmp.eq.s32.totalorder %s19, 0
      %p39 = por %p37, %p38
      %p40 = scmp.ne.s32.totalorder %s29, %s32
      %p41 = scmp.eq.s32.totalorder %s24, 1
      %p42 = por %p40, %p41
      %p43 = scmp.ne.s32.totalorder %s32, %s33
      %p44 = scmp.eq.s32.totalorder %s24, 0
      %p45 = por %p43, %p44
      %p46 = scmp.ne.s32.totalorder %s32, %s33
      %p47 = scmp.eq.s32.totalorder %s25, 1
      %p48 = por %p46, %p47
      %p50 = scmp.ne.s32.totalorder %s33, %s49
      %p51 = scmp.eq.s32.totalorder %s25, 0
      %p52 = por %p50, %p51
      %s54 = sadd.s32 %s53, 1
      %p57 = scmp.eq.s32.totalorder %s19, 1
      %p58 = scmp.ne.s32.totalorder %s53, %s55
      %p59 = scmp.eq.s32.totalorder %s19, 0
      %p60 = por %p58, %p59
      %p61 = scmp.ne.s32.totalorder %s53, %s55
      %p62 = scmp.eq.s32.totalorder %s24, 1
      %p63 = por %p61, %p62
      %p64 = scmp.ne.s32.totalorder %s55, %s56
      %p65 = scmp.eq.s32.totalorder %s24, 0
      %p66 = por %p64, %p65
      %p67 = scmp.ne.s32.totalorder %s55, %s56
      %p68 = scmp.eq.s32.totalorder %s25, 1
      %p69 = por %p67, %p68
      %p71 = scmp.ne.s32.totalorder %s56, %s70
      %p72 = scmp.eq.s32.totalorder %s25, 0
      %p73 = por %p71, %p72
      %s75 = sadd.s32 %s74, 1
      %p78 = scmp.eq.s32.totalorder %s19, 1
      %p79 = scmp.ne.s32.totalorder %s74, %s76
      %p80 = scmp.eq.s32.totalorder %s19, 0
      %p81 = por %p79, %p80
      %p82 = scmp.ne.s32.totalorder %s74, %s76
      %p83 = scmp.eq.s32.totalorder %s24, 1
      %p84 = por %p82, %p83
      %p85 = scmp.ne.s32.totalorder %s76, %s77
      %p86 = scmp.eq.s32.totalorder %s24, 0
      %p87 = por %p85, %p86
      %p88 = scmp.ne.s32.totalorder %s76, %s77
      %p89 = scmp.eq.s32.totalorder %s25, 1
      %p90 = por %p88, %p89
      %p92 = scmp.ne.s32.totalorder %s77, %s91
      %p93 = scmp.eq.s32.totalorder %s25, 0
      %p94 = por %p92, %p93
      %s96 = sadd.s32 %s95, 1
      %p99 = scmp.eq.s32.totalorder %s19, 1
      %p100 = scmp.ne.s32.totalorder %s95, %s97
      %p101 = scmp.eq.s32.totalorder %s19, 0
      %p102 = por %p100, %p101
      %p103 = scmp.ne.s32.totalorder %s95, %s97
      %p104 = scmp.eq.s32.totalorder %s24, 1
      %p105 = por %p103, %p104
      %p106 = scmp.ne.s32.totalorder %s97, %s98
      %p107 = scmp.eq.s32.totalorder %s24, 0
      %p108 = por %p106, %p107
      %p109 = scmp.ne.s32.totalorder %s97, %s98
      %p110 = scmp.eq.s32.totalorder %s25, 1
      %p111 = por %p109, %p110
      %p113 = scmp.ne.s32.totalorder %s98, %s112
      %p114 = scmp.eq.s32.totalorder %s25, 0
      %p115 = por %p113, %p114
      %s117 = sadd.s32 %s116, 1
      %p120 = scmp.eq.s32.totalorder %s19, 1
      %p121 = scmp.ne.s32.totalorder %s116, %s118
      %p122 = scmp.eq.s32.totalorder %s19, 0
      %p123 = por %p121, %p122
      %p124 = scmp.ne.s32.totalorder %s116, %s118
      %p125 = scmp.eq.s32.totalorder %s24, 1
      %p126 = por %p124, %p125
      %p127 = scmp.ne.s32.totalorder %s118, %s119
      %p128 = scmp.eq.s32.totalorder %s24, 0
      %p129 = por %p127, %p128
      %p130 = scmp.ne.s32.totalorder %s118, %s119
      %p131 = scmp.eq.s32.totalorder %s25, 1
      %p132 = por %p130, %p131
      %p134 = scmp.ne.s32.totalorder %s119, %s133
      %p135 = scmp.eq.s32.totalorder %s25, 0
      %p136 = por %p134, %p135
      %s138 = sadd.s32 %s137, 1
      %p141 = scmp.eq.s32.totalorder %s19, 1
      %p142 = scmp.ne.s32.totalorder %s137, %s139
      %p143 = scmp.eq.s32.totalorder %s19, 0
      %p144 = por %p142, %p143
      %p145 = scmp.ne.s32.totalorder %s137, %s139
      %p146 = scmp.eq.s32.totalorder %s24, 1
      %p147 = por %p145, %p146
      %p148 = scmp.ne.s32.totalorder %s139, %s140
      %p149 = scmp.eq.s32.totalorder %s24, 0
      %p150 = por %p148, %p149
      %p151 = scmp.ne.s32.totalorder %s139, %s140
      %p152 = scmp.eq.s32.totalorder %s25, 1
      %p153 = por %p151, %p152
      %p155 = scmp.ne.s32.totalorder %s140, %s154
      %p156 = scmp.eq.s32.totalorder %s25, 0
      %p157 = por %p155, %p156
      %s159 = sadd.s32 %s158, 1
      %p162 = scmp.eq.s32.totalorder %s19, 1
      %p163 = scmp.ne.s32.totalorder %s158, %s160
      %p164 = scmp.eq.s32.totalorder %s19, 0
      %p165 = por %p163, %p164
      %p166 = scmp.ne.s32.totalorder %s158, %s160
      %p167 = scmp.eq.s32.totalorder %s24, 1
      %p168 = por %p166, %p167
      %p169 = scmp.ne.s32.totalorder %s160, %s161
      %p170 = scmp.eq.s32.totalorder %s24, 0
      %p171 = por %p169, %p170
      %p172 = scmp.ne.s32.totalorder %s160, %s161
      %p173 = scmp.eq.s32.totalorder %s25, 1
      %p174 = por %p172, %p173
      %p176 = scmp.ne.s32.totalorder %s161, %s175
      %p177 = scmp.eq.s32.totalorder %s25, 0
      %p178 = por %p176, %p177
      %s180 = sadd.s32 %s179, 1
      %p183 = scmp.eq.s32.totalorder %s19, 1
      %p184 = scmp.ne.s32.totalorder %s179, %s181
      %p185 = scmp.eq.s32.totalorder %s19, 0
      %p186 = por %p184, %p185
      %p187 = scmp.ne.s32.totalorder %s179, %s181
      %p188 = scmp.eq.s32.totalorder %s24, 1
      %p189 = por %p187, %p188
      %p190 = scmp.ne.s32.totalorder %s181, %s182
      %p191 = scmp.eq.s32.totalorder %s24, 0
      %p192 = por %p190, %p191
      %p193 = scmp.ne.s32.totalorder %s181, %s182
      %p194 = scmp.eq.s32.totalorder %s25, 1
      %p195 = por %p193, %p194
      %p197 = scmp.ne.s32.totalorder %s182, %s196
      %p198 = scmp.eq.s32.totalorder %s25, 0
      %p199 = por %p197, %p198
      %s201 = sadd.s32 %s200, 1
      %p204 = scmp.eq.s32.totalorder %s19, 1
      %p205 = scmp.ne.s32.totalorder %s200, %s202
      %p206 = scmp.eq.s32.totalorder %s19, 0
      %p207 = por %p205, %p206
      %p208 = scmp.ne.s32.totalorder %s200, %s202
      %p209 = scmp.eq.s32.totalorder %s24, 1
      %p210 = por %p208, %p209
      %p211 = scmp.ne.s32.totalorder %s202, %s203
      %p212 = scmp.eq.s32.totalorder %s24, 0
      %p213 = por %p211, %p212
      %p214 = scmp.ne.s32.totalorder %s202, %s203
      %p215 = scmp.eq.s32.totalorder %s25, 1
      %p216 = por %p214, %p215
      %p218 = scmp.ne.s32.totalorder %s203, %s217
      %p219 = scmp.eq.s32.totalorder %s25, 0
      %p220 = por %p218, %p219
      %s222 = sadd.s32 %s221, 1
      %p225 = scmp.eq.s32.totalorder %s19, 1
      %p226 = scmp.ne.s32.totalorder %s221, %s223
      %p227 = scmp.eq.s32.totalorder %s19, 0
      %p228 = por %p226, %p227
      %p229 = scmp.ne.s32.totalorder %s221, %s223
      %p230 = scmp.eq.s32.totalorder %s24, 1
      %p231 = por %p229, %p230
      %p232 = scmp.ne.s32.totalorder %s223, %s224
      %p233 = scmp.eq.s32.totalorder %s24, 0
      %p234 = por %p232, %p233
      %p235 = scmp.ne.s32.totalorder %s223, %s224
      %p236 = scmp.eq.s32.totalorder %s25, 1
      %p237 = por %p235, %p236
      %p239 = scmp.ne.s32.totalorder %s224, %s238
      %p240 = scmp.eq.s32.totalorder %s25, 0
      %p241 = por %p239, %p240
      %s243 = sadd.s32 %s242, 1
      %p246 = scmp.eq.s32.totalorder %s19, 1
      %p247 = scmp.ne.s32.totalorder %s242, %s244
      %p248 = scmp.eq.s32.totalorder %s19, 0
      %p249 = por %p247, %p248
      %p250 = scmp.ne.s32.totalorder %s242, %s244
      %p251 = scmp.eq.s32.totalorder %s24, 1
      %p252 = por %p250, %p251
      %p253 = scmp.ne.s32.totalorder %s244, %s245
      %p254 = scmp.eq.s32.totalorder %s24, 0
      %p255 = por %p253, %p254
      %p256 = scmp.ne.s32.totalorder %s244, %s245
      %p257 = scmp.eq.s32.totalorder %s25, 1
      %p258 = por %p256, %p257
      %p260 = scmp.ne.s32.totalorder %s245, %s259
      %p261 = scmp.eq.s32.totalorder %s25, 0
      %p262 = por %p260, %p261
      %s264 = sadd.s32 %s263, 1
      %p267 = scmp.eq.s32.totalorder %s19, 1
      %p268 = scmp.ne.s32.totalorder %s263, %s265
      %p269 = scmp.eq.s32.totalorder %s19, 0
      %p270 = por %p268, %p269
      %p271 = scmp.ne.s32.totalorder %s263, %s265
      %p272 = scmp.eq.s32.totalorder %s24, 1
      %p273 = por %p271, %p272
      %p274 = scmp.ne.s32.totalorder %s265, %s266
      %p275 = scmp.eq.s32.totalorder %s24, 0
      %p276 = por %p274, %p275
      %p277 = scmp.ne.s32.totalorder %s265, %s266
      %p278 = scmp.eq.s32.totalorder %s25, 1
      %p279 = por %p277, %p278
      %p281 = scmp.ne.s32.totalorder %s266, %s280
      %p282 = scmp.eq.s32.totalorder %s25, 0
      %p283 = por %p281, %p282
      %s284 = ssub.s32 %s19, %s26
      %p285 = scmp.eq.s32.totalorder %s284, 0
      %s287 = sadd.s32 %s286, 1
      %s288 = scalar_select %p285, %s286, %s287
      %p291 = pneg %p285
      %p292 = scmp.eq.s32.totalorder %s19, 1
      %p293 = por %p291, %p292
      %p294 = scmp.ne.s32.totalorder %s286, %s289
      %p295 = scmp.eq.s32.totalorder %s19, 0
      %p296 = por %p294, %p295
      %p297 = scmp.ne.s32.totalorder %s286, %s289
      %p298 = scmp.eq.s32.totalorder %s24, 1
      %p299 = por %p297, %p298
      %p300 = scmp.ne.s32.totalorder %s289, %s290
      %p301 = scmp.eq.s32.totalorder %s24, 0
      %p302 = por %p300, %p301
      %p303 = scmp.ne.s32.totalorder %s289, %s290
      %p304 = scmp.eq.s32.totalorder %s25, 1
      %p305 = por %p303, %p304
      %p307 = scmp.ne.s32.totalorder %s290, %s306
      %p308 = scmp.eq.s32.totalorder %s25, 0
      %p309 = por %p307, %p308
      %p310 = scmp.le.s32.totalorder 1, %s19
      %p311 = scmp.lt.s32.totalorder %s19, 3
      %p312 = pnand %p310, %p311
      %p313 = pneg %p312
      // Predicated region
      $region9: #{mnist_net_forward.1} parent=5 // pred_check
        _
      $region10: #{mnist_net_forward.1} parent=5 // pred_check_branch
        %315 = sbr.rel (%p312) target = $region12
      $region11: #{mnist_net_forward.1} parent=5 // pred_region
        %s316 = ssub.s32 %s19, 1
        // Predicated region
        $region13: #{mnist_net_forward.1} parent=11 // pred_check
          %p317 = pneg %p66
        $region14: #{mnist_net_forward.1} parent=11 // pred_check_branch
          %319 = sbr.rel (%p317) target = $region16
        $region15: #{mnist_net_forward.1} parent=11 // pred_region
          _
        $region16: #{mnist_net_forward.1} parent=11 // pred_fallthru
          _
        // Predicated region
        $region17: #{mnist_net_forward.1} parent=11 // pred_check
          %p320 = pneg %p87
        $region18: #{mnist_net_forward.1} parent=11 // pred_check_branch
          %322 = sbr.rel (%p320) target = $region20
        $region19: #{mnist_net_forward.1} parent=11 // pred_region
          _
        $region20: #{mnist_net_forward.1} parent=11 // pred_fallthru
          _
        // Predicated region
        $region21: #{mnist_net_forward.1} parent=11 // pred_check
          %p323 = pneg %p108
        $region22: #{mnist_net_forward.1} parent=11 // pred_check_branch
          %325 = sbr.rel (%p323) target = $region24
        $region23: #{mnist_net_forward.1} parent=11 // pred_region
          _
        $region24: #{mnist_net_forward.1} parent=11 // pred_fallthru
          _
        // Predicated region
        $region25: #{mnist_net_forward.1} parent=11 // pred_check
          %p326 = pneg %p129
        $region26: #{mnist_net_forward.1} parent=11 // pred_check_branch
          %328 = sbr.rel (%p326) target = $region28
        $region27: #{mnist_net_forward.1} parent=11 // pred_region
          _
        $region28: #{mnist_net_forward.1} parent=11 // pred_fallthru
          _
        // Predicated region
        $region29: #{mnist_net_forward.1} parent=11 // pred_check
          %p329 = pneg %p150
        $region30: #{mnist_net_forward.1} parent=11 // pred_check_branch
          %331 = sbr.rel (%p329) target = $region32
        $region31: #{mnist_net_forward.1} parent=11 // pred_region
          _
        $region32: #{mnist_net_forward.1} parent=11 // pred_fallthru
          _
        // Predicated region
        $region33: #{mnist_net_forward.1} parent=11 // pred_check
          %p332 = pneg %p171
        $region34: #{mnist_net_forward.1} parent=11 // pred_check_branch
          %334 = sbr.rel (%p332) target = $region36
        $region35: #{mnist_net_forward.1} parent=11 // pred_region
          _
        $region36: #{mnist_net_forward.1} parent=11 // pred_fallthru
          _
        // Predicated region
        $region37: #{mnist_net_forward.1} parent=11 // pred_check
          %p335 = pneg %p192
        $region38: #{mnist_net_forward.1} parent=11 // pred_check_branch
          %337 = sbr.rel (%p335) target = $region40
        $region39: #{mnist_net_forward.1} parent=11 // pred_region
          %s339 = ssub.s32 12928, 12928
          %340 = vsyncadd [#allocation3], %s339
          %s341 = sshll.u32 [#allocation2], 4
          %s342 = int_to_ptr.vmem [resolvable:$true] %s341
          %347 = dma.hbm_to_vmem [thread:$0]  %s7, 12928, %s342, [#allocation3], 128, 128, 8
        $region40: #{mnist_net_forward.1} parent=11 // pred_fallthru
          _
        // Predicated region
        $region41: #{mnist_net_forward.1} parent=11 // pred_check
          %p348 = pneg %p213
        $region42: #{mnist_net_forward.1} parent=11 // pred_check_branch
          %350 = sbr.rel (%p348) target = $region44
        $region43: #{mnist_net_forward.1} parent=11 // pred_region
          _
        $region44: #{mnist_net_forward.1} parent=11 // pred_fallthru
          _
        // Predicated region
        $region45: #{mnist_net_forward.1} parent=11 // pred_check
          %p351 = pneg %p234
        $region46: #{mnist_net_forward.1} parent=11 // pred_check_branch
          %353 = sbr.rel (%p351) target = $region48
        $region47: #{mnist_net_forward.1} parent=11 // pred_region
          _
        $region48: #{mnist_net_forward.1} parent=11 // pred_fallthru
          _
        // Predicated region
        $region49: #{mnist_net_forward.1} parent=11 // pred_check
          %p354 = pneg %p255
        $region50: #{mnist_net_forward.1} parent=11 // pred_check_branch
          %356 = sbr.rel (%p354) target = $region52
        $region51: #{mnist_net_forward.1} parent=11 // pred_region
          _
        $region52: #{mnist_net_forward.1} parent=11 // pred_fallthru
          _
        // Predicated region
        $region53: #{mnist_net_forward.1} parent=11 // pred_check
          %p357 = pneg %p276
        $region54: #{mnist_net_forward.1} parent=11 // pred_check_branch
          %359 = sbr.rel (%p357) target = $region56
        $region55: #{mnist_net_forward.1} parent=11 // pred_region
          _
        $region56: #{mnist_net_forward.1} parent=11 // pred_fallthru
          _
      $region12: #{mnist_net_forward.1} parent=5 // pred_fallthru
        _
      %p360 = scmp.lt.s32.totalorder %s19, 2
      // Predicated region
      $region57: #{mnist_net_forward.1} parent=5 // pred_check
        %p361 = pneg %p360
      $region58: #{mnist_net_forward.1} parent=5 // pred_check_branch
        %363 = sbr.rel (%p361) target = $region60
      $region59: #{mnist_net_forward.1} parent=5 // pred_region
        // Predicated region
        $region61: #{mnist_net_forward.1} parent=59 // pred_check
          %p364 = pneg %p39
        $region62: #{mnist_net_forward.1} parent=59 // pred_check_branch
          %366 = sbr.rel (%p364) target = $region64
        $region63: #{mnist_net_forward.1} parent=59 // pred_region
          %p367 = scmp.lt.s32.totalorder %s19, 1
          %s368 = scalar_select %p367, %s19, 1
          %s369 = smul.addr %s368, 8
          %s370 = scalar_lea.vmem %s0, %s369
        $region64: #{mnist_net_forward.1} parent=59 // pred_fallthru
          _
      $region60: #{mnist_net_forward.1} parent=5 // pred_fallthru
        _
      %p371 = scmp.le.s32.totalorder 1, %s19
      %p372 = scmp.lt.s32.totalorder %s19, 3
      %p373 = pnand %p371, %p372
      %p374 = pneg %p373
      // Predicated region
      $region65: #{mnist_net_forward.1} parent=5 // pred_check
        _
      $region66: #{mnist_net_forward.1} parent=5 // pred_check_branch
        %376 = sbr.rel (%p373) target = $region68
      $region67: #{mnist_net_forward.1} parent=5 // pred_region
        %s377 = ssub.s32 %s19, 1
        // Predicated region
        $region69: #{mnist_net_forward.1} parent=67 // pred_check
          %p378 = pneg %p192
        $region70: #{mnist_net_forward.1} parent=67 // pred_check_branch
          %380 = sbr.rel (%p378) target = $region72
        $region71: #{mnist_net_forward.1} parent=67 // pred_region
          %381 = dma.done [#allocation3], 12928
        $region72: #{mnist_net_forward.1} parent=67 // pred_fallthru
          _
        %p382 = scmp.lt.s32.totalorder %s24, 1
        %s383 = scalar_select %p382, %s24, 1
        %s384 = smul.addr %s383, 8
        %s385 = scalar_lea.vmem %s0, %s384
        %p386 = pneg %p45
        %p387 = pneg %p42
        %p388 = pneg %p66
        %p389 = pneg %p63
        %p390 = pneg %p87
        %p391 = pneg %p84
        %p392 = pneg %p108
        %p393 = pneg %p105
        %p394 = pneg %p129
        %p395 = pneg %p126
        %p396 = pneg %p150
        %p397 = pneg %p147
        %p398 = pneg %p171
        %p399 = pneg %p168
        %p400 = pneg %p192
        %p401 = pneg %p189
        %p402 = pneg %p213
        %p403 = pneg %p210
        %p404 = pneg %p234
        %p405 = pneg %p231
        %p406 = pneg %p255
        %p407 = pneg %p252
        %p408 = pneg %p276
        %p409 = pneg %p273
        %p410 = pneg %p302
        %p411 = pneg %p299
        %p412 = scmp.lt.s32.totalorder %s24, 1
        %s413 = scalar_select %p412, %s24, 1
        %s414 = smul.addr %s413, 2
        %s415 = smul.addr %s414, 8
        %s416 = scalar_lea.vmem %s12, %s415
        %p417 = scmp.lt.s32.totalorder %s24, 1
        %s418 = scalar_select %p417, %s24, 1
        %s419 = smul.addr %s418, 8
        %s420 = scalar_lea.vmem %s0, %s419
        %p421 = scmp.lt.s32.totalorder %s24, 1
        %s422 = scalar_select %p421, %s24, 1
        %s423 = smul.addr %s422, 2
        %s424 = smul.addr %s423, 8
        %s425 = scalar_lea.vmem %s12, %s424
        %v427 = vld [vmem:[%s420] sm:$0xff]
        %v429 = vlaneseq
        %v430 = vshrl.u32 %v429, 7
        %v431 = vsub.s32 0, %v430
        %v432 = vrot.slane %v427, %v431
        %v433 = vlaneseq
        %v434 = vshrl.u32 %v433, 7
        %v435 = vsub.s32 1, %v434
        %v436 = vrot.slane %v427, %v435
        %v437 = vlaneseq
        %v438 = vshrl.u32 %v437, 7
        %v439 = vsub.s32 2, %v438
        %v440 = vrot.slane %v427, %v439
        %v441 = vlaneseq
        %v442 = vshrl.u32 %v441, 7
        %v443 = vsub.s32 3, %v442
        %v444 = vrot.slane %v427, %v443
        %v445 = vlaneseq
        %v446 = vshrl.u32 %v445, 7
        %v447 = vsub.s32 4, %v446
        %v448 = vrot.slane %v427, %v447
        %v449 = vlaneseq
        %v450 = vshrl.u32 %v449, 7
        %v451 = vsub.s32 5, %v450
        %v452 = vrot.slane %v427, %v451
        %v453 = vlaneseq
        %v454 = vshrl.u32 %v453, 7
        %v455 = vsub.s32 6, %v454
        %v456 = vrot.slane %v427, %v455
        %464 = vrot.lane.b32.xlu0 %v432, 127
        %v465 = vpop.permute.xlu0 %464
        %466 = vrot.lane.b32.xlu0 %v436, 127
        %v467 = vpop.permute.xlu0 %466
        %468 = vrot.lane.b32.xlu0 %v440, 127
        %v469 = vpop.permute.xlu0 %468
        %470 = vrot.lane.b32.xlu0 %v444, 127
        %v471 = vpop.permute.xlu0 %470
        %472 = vrot.lane.b32.xlu0 %v448, 127
        %v473 = vpop.permute.xlu0 %472
        %474 = vrot.lane.b32.xlu0 %v452, 127
        %v475 = vpop.permute.xlu0 %474
        %476 = vrot.lane.b32.xlu0 %v456, 127
        %v477 = vpop.permute.xlu0 %476
        %vm478 = vcmask 1039360
        %v479 = vsel %vm478, %v465, %v467
        %v480 = vsel %vm478, %v467, %v469
        %v481 = vsel %vm478, %v469, %v471
        %v482 = vsel %vm478, %v471, %v473
        %v483 = vsel %vm478, %v473, %v475
        %v484 = vsel %vm478, %v475, %v477
        %492 = vrot.lane.b32.xlu0 %v432, 126
        %v493 = vpop.permute.xlu0 %492
        %494 = vrot.lane.b32.xlu0 %v436, 126
        %v495 = vpop.permute.xlu0 %494
        %496 = vrot.lane.b32.xlu0 %v440, 126
        %v497 = vpop.permute.xlu0 %496
        %498 = vrot.lane.b32.xlu0 %v444, 126
        %v499 = vpop.permute.xlu0 %498
        %500 = vrot.lane.b32.xlu0 %v448, 126
        %v501 = vpop.permute.xlu0 %500
        %502 = vrot.lane.b32.xlu0 %v452, 126
        %v503 = vpop.permute.xlu0 %502
        %504 = vrot.lane.b32.xlu0 %v456, 126
        %v505 = vpop.permute.xlu0 %504
        %vm506 = vcmask 1031168
        %v507 = vsel %vm506, %v493, %v495
        %v508 = vsel %vm506, %v495, %v497
        %v509 = vsel %vm506, %v497, %v499
        %v510 = vsel %vm506, %v499, %v501
        %v511 = vsel %vm506, %v501, %v503
        %v512 = vsel %vm506, %v503, %v505
        %520 = vrot.lane.b32.xlu0 %v432, 98
        %v521 = vpop.permute.xlu0 %520
        %522 = vrot.lane.b32.xlu0 %v436, 98
        %v523 = vpop.permute.xlu0 %522
        %524 = vrot.lane.b32.xlu0 %v440, 98
        %v525 = vpop.permute.xlu0 %524
        %526 = vrot.lane.b32.xlu0 %v444, 98
        %v527 = vpop.permute.xlu0 %526
        %528 = vrot.lane.b32.xlu0 %v448, 98
        %v529 = vpop.permute.xlu0 %528
        %530 = vrot.lane.b32.xlu0 %v452, 98
        %v531 = vpop.permute.xlu0 %530
        %532 = vrot.lane.b32.xlu0 %v456, 98
        %v533 = vpop.permute.xlu0 %532
        %vm534 = vcmask 801792
        %v535 = vsel %vm534, %v521, %v523
        %v536 = vsel %vm534, %v523, %v525
        %v537 = vsel %vm534, %v525, %v527
        %v538 = vsel %vm534, %v527, %v529
        %v539 = vsel %vm534, %v529, %v531
        %v540 = vsel %vm534, %v531, %v533
        %548 = vrot.lane.b32.xlu0 %v432, 97
        %v549 = vpop.permute.xlu0 %548
        %550 = vrot.lane.b32.xlu0 %v436, 97
        %v551 = vpop.permute.xlu0 %550
        %552 = vrot.lane.b32.xlu0 %v440, 97
        %v553 = vpop.permute.xlu0 %552
        %554 = vrot.lane.b32.xlu0 %v444, 97
        %v555 = vpop.permute.xlu0 %554
        %556 = vrot.lane.b32.xlu0 %v448, 97
        %v557 = vpop.permute.xlu0 %556
        %558 = vrot.lane.b32.xlu0 %v452, 97
        %v559 = vpop.permute.xlu0 %558
        %560 = vrot.lane.b32.xlu0 %v456, 97
        %v561 = vpop.permute.xlu0 %560
        %vm562 = vcmask 793600
        %v563 = vsel %vm562, %v549, %v551
        %v564 = vsel %vm562, %v551, %v553
        %v565 = vsel %vm562, %v553, %v555
        %v566 = vsel %vm562, %v555, %v557
        %v567 = vsel %vm562, %v557, %v559
        %v568 = vsel %vm562, %v559, %v561
        %576 = vrot.lane.b32.xlu0 %v432, 96
        %v577 = vpop.permute.xlu0 %576
        %578 = vrot.lane.b32.xlu0 %v436, 96
        %v579 = vpop.permute.xlu0 %578
        %580 = vrot.lane.b32.xlu0 %v440, 96
        %v581 = vpop.permute.xlu0 %580
        %582 = vrot.lane.b32.xlu0 %v444, 96
        %v583 = vpop.permute.xlu0 %582
        %584 = vrot.lane.b32.xlu0 %v448, 96
        %v585 = vpop.permute.xlu0 %584
        %586 = vrot.lane.b32.xlu0 %v452, 96
        %v587 = vpop.permute.xlu0 %586
        %588 = vrot.lane.b32.xlu0 %v456, 96
        %v589 = vpop.permute.xlu0 %588
        %vm590 = vcmask 785408
        %v591 = vsel %vm590, %v577, %v579
        %v592 = vsel %vm590, %v579, %v581
        %v593 = vsel %vm590, %v581, %v583
        %v594 = vsel %vm590, %v583, %v585
        %v595 = vsel %vm590, %v585, %v587
        %v596 = vsel %vm590, %v587, %v589
        %v604 = vlaneseq
        %v605 = vshrl.u32 %v604, 7
        %v606 = vsub.s32 7, %v605
        %v607 = vrot.slane %v427, %v606
        %608 = vrot.lane.b32.xlu0 %v432, 68
        %v609 = vpop.permute.xlu0 %608
        %610 = vrot.lane.b32.xlu0 %v436, 68
        %v611 = vpop.permute.xlu0 %610
        %612 = vrot.lane.b32.xlu0 %v440, 68
        %v613 = vpop.permute.xlu0 %612
        %614 = vrot.lane.b32.xlu0 %v444, 68
        %v615 = vpop.permute.xlu0 %614
        %616 = vrot.lane.b32.xlu0 %v448, 68
        %v617 = vpop.permute.xlu0 %616
        %618 = vrot.lane.b32.xlu0 %v452, 68
        %v619 = vpop.permute.xlu0 %618
        %620 = vrot.lane.b32.xlu0 %v456, 68
        %v621 = vpop.permute.xlu0 %620
        %622 = vrot.lane.b32.xlu0 %v607, 68
        %v623 = vpop.permute.xlu0 %622
        %vm624 = vcmask 556032
        %v625 = vsel %vm624, %v609, %v611
        %v626 = vsel %vm624, %v611, %v613
        %v627 = vsel %vm624, %v613, %v615
        %v628 = vsel %vm624, %v615, %v617
        %v629 = vsel %vm624, %v617, %v619
        %v630 = vsel %vm624, %v619, %v621
        %v631 = vsel %vm624, %v621, %v623
        %639 = vrot.lane.b32.xlu0 %v432, 67
        %v640 = vpop.permute.xlu0 %639
        %641 = vrot.lane.b32.xlu0 %v436, 67
        %v642 = vpop.permute.xlu0 %641
        %643 = vrot.lane.b32.xlu0 %v440, 67
        %v644 = vpop.permute.xlu0 %643
        %645 = vrot.lane.b32.xlu0 %v444, 67
        %v646 = vpop.permute.xlu0 %645
        %647 = vrot.lane.b32.xlu0 %v448, 67
        %v648 = vpop.permute.xlu0 %647
        %649 = vrot.lane.b32.xlu0 %v452, 67
        %v650 = vpop.permute.xlu0 %649
        %651 = vrot.lane.b32.xlu0 %v456, 67
        %v652 = vpop.permute.xlu0 %651
        %653 = vrot.lane.b32.xlu0 %v607, 67
        %v654 = vpop.permute.xlu0 %653
        %vm655 = vcmask 547840
        %v656 = vsel %vm655, %v640, %v642
        %v657 = vsel %vm655, %v642, %v644
        %v658 = vsel %vm655, %v644, %v646
        %v659 = vsel %vm655, %v646, %v648
        %v660 = vsel %vm655, %v648, %v650
        %v661 = vsel %vm655, %v650, %v652
        %v662 = vsel %vm655, %v652, %v654
        %670 = vrot.lane.b32.xlu0 %v432, 66
        %v671 = vpop.permute.xlu0 %670
        %672 = vrot.lane.b32.xlu0 %v436, 66
        %v673 = vpop.permute.xlu0 %672
        %674 = vrot.lane.b32.xlu0 %v440, 66
        %v675 = vpop.permute.xlu0 %674
        %676 = vrot.lane.b32.xlu0 %v444, 66
        %v677 = vpop.permute.xlu0 %676
        %678 = vrot.lane.b32.xlu0 %v448, 66
        %v679 = vpop.permute.xlu0 %678
        %680 = vrot.lane.b32.xlu0 %v452, 66
        %v681 = vpop.permute.xlu0 %680
        %682 = vrot.lane.b32.xlu0 %v456, 66
        %v683 = vpop.permute.xlu0 %682
        %684 = vrot.lane.b32.xlu0 %v607, 66
        %v685 = vpop.permute.xlu0 %684
        %vm686 = vcmask 539648
        %v687 = vsel %vm686, %v671, %v673
        %v688 = vsel %vm686, %v673, %v675
        %v689 = vsel %vm686, %v675, %v677
        %v690 = vsel %vm686, %v677, %v679
        %v691 = vsel %vm686, %v679, %v681
        %v692 = vsel %vm686, %v681, %v683
        %v693 = vsel %vm686, %v683, %v685
        %vm701 = vcmask 1040384
        %v702 = vsel %vm701, %v432, %v479
        %v703 = vsel %vm701, %v436, %v480
        %v704 = vsel %vm701, %v440, %v481
        %v705 = vsel %vm701, %v444, %v482
        %v706 = vsel %vm701, %v448, %v483
        %v707 = vsel %vm701, %v452, %v484
        %v708 = vsel %vm701, %v456, %v477
        %vm709 = vcmask 1041408
        %v710 = vsel %vm709, %v702, %v507
        %v711 = vsel %vm709, %v703, %v508
        %v712 = vsel %vm709, %v704, %v509
        %v713 = vsel %vm709, %v705, %v510
        %v714 = vsel %vm709, %v706, %v511
        %v715 = vsel %vm709, %v707, %v512
        %v716 = vsel %vm709, %v708, %v505
        %vm717 = vcmask 1042432
        %v718 = vsel %vm717, %v710, %v535
        %v719 = vsel %vm717, %v711, %v536
        %v720 = vsel %vm717, %v712, %v537
        %v721 = vsel %vm717, %v713, %v538
        %v722 = vsel %vm717, %v714, %v539
        %v723 = vsel %vm717, %v715, %v540
        %v724 = vsel %vm717, %v716, %v533
        %vm725 = vcmask 1043456
        %v726 = vsel %vm725, %v718, %v563
        %v727 = vsel %vm725, %v719, %v564
        %v728 = vsel %vm725, %v720, %v565
        %v729 = vsel %vm725, %v721, %v566
        %v730 = vsel %vm725, %v722, %v567
        %v731 = vsel %vm725, %v723, %v568
        %v732 = vsel %vm725, %v724, %v561
        %vm733 = vcmask 1044480
        %v734 = vsel %vm733, %v726, %v591
        %v735 = vsel %vm733, %v727, %v592
        %v736 = vsel %vm733, %v728, %v593
        %v737 = vsel %vm733, %v729, %v594
        %v738 = vsel %vm733, %v730, %v595
        %v739 = vsel %vm733, %v731, %v596
        %v740 = vsel %vm733, %v732, %v589
        %vm741 = vcmask 1045504
        %v742 = vsel %vm741, %v734, %v625
        %v743 = vsel %vm741, %v735, %v626
        %v744 = vsel %vm741, %v736, %v627
        %v745 = vsel %vm741, %v737, %v628
        %v746 = vsel %vm741, %v738, %v629
        %v747 = vsel %vm741, %v739, %v630
        %v748 = vsel %vm741, %v740, %v631
        %vm749 = vcmask 1046528
        %v750 = vsel %vm749, %v742, %v656
        %v751 = vsel %vm749, %v743, %v657
        %v752 = vsel %vm749, %v744, %v658
        %v753 = vsel %vm749, %v745, %v659
        %v754 = vsel %vm749, %v746, %v660
        %v755 = vsel %vm749, %v747, %v661
        %v756 = vsel %vm749, %v748, %v662
        %v757 = vpack.c.bf16 %v687, %v750
        %v758 = vpack.c.bf16 %v688, %v751
        %v759 = vpack.c.bf16 %v689, %v752
        %v760 = vpack.c.bf16 %v690, %v753
        %v761 = vpack.c.bf16 %v691, %v754
        %v762 = vpack.c.bf16 %v692, %v755
        %v763 = vpack.c.bf16 %v693, %v756
        %v764 = vld [vmem:[%s1] sm:$0xf]
        %v765 = vld [vmem:[%s1 + $0x4] sm:$0x1]
        %v766 = vld [vmem:[%s2] sm:$0xff]
        %v767 = vld [vmem:[%s2 + $0x8] sm:$0x3]
        %769 = vset.pattern.permute.xlu0 0
        %770 = vperm.xlu0 %769, %v766
        %v771 = vpop.permute.xlu0 %770
        %774 = vset.pattern.permute.xlu0 0
        %775 = vperm.xlu0 %774, %v767
        %v776 = vpop.permute.xlu0 %775
        %v780 = vunpack.c.l.b16 %v764
        %v781 = vunpack.c.l.b16 %v765
        %v782 = vpack.c.b16 %v781, %v780
        %vm783 = vcmask 72704
        %v785 = vsel %vm783, %v782, 0
        %v787 = vsel %vm725, 4294967295, 65535
        %v788 = vsel %vm733, %v787, 0
        %v790 = vand.u32 %v757, %v788
        %v793 = vand.u32 %v758, %v788
        %v796 = vand.u32 %v759, %v788
        %v799 = vand.u32 %v760, %v788
        %v802 = vand.u32 %v761, %v788
        %v805 = vand.u32 %v762, %v788
        %v808 = vand.u32 %v763, %v788
        %810 = vmatprep.subr.bf16.mxu0 %v793
        %811 = vmatpush1.bf16.msra.mxu0 %v790
        %812 = vmatprep.subr.bf16.mxu0 0
        %813 = vmatpush1.bf16.msra.mxu0 0
        %814 = vmatprep.subr.bf16.mxu0 0
        %815 = vmatpush1.bf16.msra.mxu0 0
        %816 = vmatprep.subr.bf16.mxu0 0
        %817 = vmatpush1.bf16.msra.mxu0 0
        %818 = vmatprep.subr.bf16.mxu0 0
        %819 = vmatpush1.bf16.msra.mxu0 0
        %820 = vmatprep.subr.bf16.mxu0 0
        %821 = vmatpush1.bf16.msra.mxu0 0
        %822 = vmatprep.subr.bf16.mxu0 0
        %823 = vmatpush1.bf16.msra.mxu0 0
        %824 = vmatprep.subr.bf16.mxu0 0
        %825 = vmatpush1.bf16.msra.mxu0 0
        %826 = vmatprep.subr.bf16.mxu0 0
        %827 = vmatpush1.bf16.msra.mxu0 0
        %828 = vmatprep.subr.bf16.mxu0 0
        %829 = vmatpush1.bf16.msra.mxu0 0
        %830 = vmatprep.subr.bf16.mxu0 0
        %831 = vmatpush1.bf16.msra.mxu0 0
        %832 = vmatprep.subr.bf16.mxu0 0
        %833 = vmatpush1.bf16.msra.mxu0 0
        %834 = vmatprep.subr.bf16.mxu0 0
        %835 = vmatpush1.bf16.msra.mxu0 0
        %836 = vmatprep.subr.bf16.mxu0 0
        %837 = vmatpush1.bf16.msra.mxu0 0
        %838 = vmatprep.subr.bf16.mxu0 0
        %839 = vmatpush1.bf16.msra.mxu0 0
        %840 = vmatprep.subr.bf16.mxu0 0
        %841 = vmatpush1.bf16.msra.mxu0 0
        %842 = vmatprep.mubr.bf16.mxu0 0
        %843 = vmatmul.mubr.bf16.gmra.mrb[0].mxu0 %v785
        %v844 = vpop.f32.mrb[0].mxu0
        %v845 = vadd.f32 %v771, %v844
        %v846 = vpop.f32.mrb[0].mxu0
        %v847 = vadd.f32 %v771, %v846
        %v848 = vpop.f32.mrb[0].mxu0
        %v849 = vadd.f32 %v776, %v848
        %v850 = vpop.f32.mrb[0].mxu0
        %v851 = vadd.f32 %v776, %v850
        %852 = vdwg.mxu0
        %853 = vmatprep.subr.bf16.mxu0 %v799
        %854 = vmatpush1.bf16.msra.mxu0 %v796
        %855 = vmatprep.subr.bf16.mxu0 0
        %856 = vmatpush1.bf16.msra.mxu0 0
        %857 = vmatprep.subr.bf16.mxu0 0
        %858 = vmatpush1.bf16.msra.mxu0 0
        %859 = vmatprep.subr.bf16.mxu0 0
        %860 = vmatpush1.bf16.msra.mxu0 0
        %861 = vmatprep.subr.bf16.mxu0 0
        %862 = vmatpush1.bf16.msra.mxu0 0
        %863 = vmatprep.subr.bf16.mxu0 0
        %864 = vmatpush1.bf16.msra.mxu0 0
        %865 = vmatprep.subr.bf16.mxu0 0
        %866 = vmatpush1.bf16.msra.mxu0 0
        %867 = vmatprep.subr.bf16.mxu0 0
        %868 = vmatpush1.bf16.msra.mxu0 0
        %869 = vmatprep.subr.bf16.mxu0 0
        %870 = vmatpush1.bf16.msra.mxu0 0
        %871 = vmatprep.subr.bf16.mxu0 0
        %872 = vmatpush1.bf16.msra.mxu0 0
        %873 = vmatprep.subr.bf16.mxu0 0
        %874 = vmatpush1.bf16.msra.mxu0 0
        %875 = vmatprep.subr.bf16.mxu0 0
        %876 = vmatpush1.bf16.msra.mxu0 0
        %877 = vmatprep.subr.bf16.mxu0 0
        %878 = vmatpush1.bf16.msra.mxu0 0
        %879 = vmatprep.subr.bf16.mxu0 0
        %880 = vmatpush1.bf16.msra.mxu0 0
        %881 = vmatprep.subr.bf16.mxu0 0
        %882 = vmatpush1.bf16.msra.mxu0 0
        %883 = vmatprep.subr.bf16.mxu0 0
        %884 = vmatpush1.bf16.msra.mxu0 0
        %885 = vmatprep.mubr.bf16.mxu0 0
        %886 = vmatmul.mubr.bf16.gmra.mrb[0].mxu0 %v785
        %v887 = vpop.f32.mrb[0].mxu0
        %v888 = vadd.f32 %v771, %v887
        %v889 = vpop.f32.mrb[0].mxu0
        %v890 = vadd.f32 %v771, %v889
        %v891 = vpop.f32.mrb[0].mxu0
        %v892 = vadd.f32 %v776, %v891
        %v893 = vpop.f32.mrb[0].mxu0
        %v894 = vadd.f32 %v776, %v893
        %895 = vdwg.mxu0
        %896 = vmatprep.subr.bf16.mxu0 %v805
        %897 = vmatpush1.bf16.msra.mxu0 %v802
        %898 = vmatprep.subr.bf16.mxu0 0
        %899 = vmatpush1.bf16.msra.mxu0 0
        %900 = vmatprep.subr.bf16.mxu0 0
        %901 = vmatpush1.bf16.msra.mxu0 0
        %902 = vmatprep.subr.bf16.mxu0 0
        %903 = vmatpush1.bf16.msra.mxu0 0
        %904 = vmatprep.subr.bf16.mxu0 0
        %905 = vmatpush1.bf16.msra.mxu0 0
        %906 = vmatprep.subr.bf16.mxu0 0
        %907 = vmatpush1.bf16.msra.mxu0 0
        %908 = vmatprep.subr.bf16.mxu0 0
        %909 = vmatpush1.bf16.msra.mxu0 0
        %910 = vmatprep.subr.bf16.mxu0 0
        %911 = vmatpush1.bf16.msra.mxu0 0
        %912 = vmatprep.subr.bf16.mxu0 0
        %913 = vmatpush1.bf16.msra.mxu0 0
        %914 = vmatprep.subr.bf16.mxu0 0
        %915 = vmatpush1.bf16.msra.mxu0 0
        %916 = vmatprep.subr.bf16.mxu0 0
        %917 = vmatpush1.bf16.msra.mxu0 0
        %918 = vmatprep.subr.bf16.mxu0 0
        %919 = vmatpush1.bf16.msra.mxu0 0
        %920 = vmatprep.subr.bf16.mxu0 0
        %921 = vmatpush1.bf16.msra.mxu0 0
        %922 = vmatprep.subr.bf16.mxu0 0
        %923 = vmatpush1.bf16.msra.mxu0 0
        %924 = vmatprep.subr.bf16.mxu0 0
        %925 = vmatpush1.bf16.msra.mxu0 0
        %926 = vmatprep.subr.bf16.mxu0 0
        %927 = vmatpush1.bf16.msra.mxu0 0
        %928 = vmatprep.mubr.bf16.mxu0 0
        %929 = vmatmul.mubr.bf16.gmra.mrb[0].mxu0 %v785
        %v930 = vpop.f32.mrb[0].mxu0
        %v931 = vadd.f32 %v771, %v930
        %v932 = vpop.f32.mrb[0].mxu0
        %v933 = vadd.f32 %v771, %v932
        %v934 = vpop.f32.mrb[0].mxu0
        %v935 = vadd.f32 %v776, %v934
        %v936 = vpop.f32.mrb[0].mxu0
        %v937 = vadd.f32 %v776, %v936
        %938 = vdwg.mxu0
        %939 = vmatprep.subr.bf16.mxu0 0
        %940 = vmatpush1.bf16.msra.mxu0 %v808
        %941 = vmatprep.subr.bf16.mxu0 0
        %942 = vmatpush1.bf16.msra.mxu0 0
        %943 = vmatprep.subr.bf16.mxu0 0
        %944 = vmatpush1.bf16.msra.mxu0 0
        %945 = vmatprep.subr.bf16.mxu0 0
        %946 = vmatpush1.bf16.msra.mxu0 0
        %947 = vmatprep.subr.bf16.mxu0 0
        %948 = vmatpush1.bf16.msra.mxu0 0
        %949 = vmatprep.subr.bf16.mxu0 0
        %950 = vmatpush1.bf16.msra.mxu0 0
        %951 = vmatprep.subr.bf16.mxu0 0
        %952 = vmatpush1.bf16.msra.mxu0 0
        %953 = vmatprep.subr.bf16.mxu0 0
        %954 = vmatpush1.bf16.msra.mxu0 0
        %955 = vmatprep.subr.bf16.mxu0 0
        %956 = vmatpush1.bf16.msra.mxu0 0
        %957 = vmatprep.subr.bf16.mxu0 0
        %958 = vmatpush1.bf16.msra.mxu0 0
        %959 = vmatprep.subr.bf16.mxu0 0
        %960 = vmatpush1.bf16.msra.mxu0 0
        %961 = vmatprep.subr.bf16.mxu0 0
        %962 = vmatpush1.bf16.msra.mxu0 0
        %963 = vmatprep.subr.bf16.mxu0 0
        %964 = vmatpush1.bf16.msra.mxu0 0
        %965 = vmatprep.subr.bf16.mxu0 0
        %966 = vmatpush1.bf16.msra.mxu0 0
        %967 = vmatprep.subr.bf16.mxu0 0
        %968 = vmatpush1.bf16.msra.mxu0 0
        %969 = vmatprep.subr.bf16.mxu0 0
        %970 = vmatpush1.bf16.msra.mxu0 0
        %971 = vmatprep.mubr.bf16.mxu0 0
        %972 = vmatmul.mubr.bf16.gmra.mrb[0].mxu0 %v785
        %v973 = vpop.f32.mrb[0].mxu0
        %v974 = vadd.f32 %v771, %v973
        %v975 = vpop.f32.mrb[0].mxu0
        %v976 = vpop.f32.mrb[0].mxu0
        %v977 = vadd.f32 %v776, %v976
        %v978 = vpop.f32.mrb[0].mxu0
        %979 = vdwg.mxu0
        %v980 = vmax.f32 %v845, 0.0
        %v981 = vmax.f32 %v847, 0.0
        %v982 = vmax.f32 %v888, 0.0
        %v983 = vmax.f32 %v890, 0.0
        %v984 = vmax.f32 %v931, 0.0
        %v985 = vmax.f32 %v933, 0.0
        %v986 = vmax.f32 %v974, 0.0
        %v987 = vmax.f32 %v849, 0.0
        %v988 = vmax.f32 %v851, 0.0
        %v989 = vmax.f32 %v892, 0.0
        %v990 = vmax.f32 %v894, 0.0
        %v991 = vmax.f32 %v935, 0.0
        %v992 = vmax.f32 %v937, 0.0
        %v993 = vmax.f32 %v977, 0.0
        %1008 = vrot.lane.b32.xlu0 %v980, 127
        %v1009 = vpop.permute.xlu0 %1008
        %1010 = vrot.lane.b32.xlu0 %v981, 127
        %v1011 = vpop.permute.xlu0 %1010
        %1012 = vrot.lane.b32.xlu0 %v982, 127
        %v1013 = vpop.permute.xlu0 %1012
        %1014 = vrot.lane.b32.xlu0 %v983, 127
        %v1015 = vpop.permute.xlu0 %1014
        %1016 = vrot.lane.b32.xlu0 %v984, 127
        %v1017 = vpop.permute.xlu0 %1016
        %1018 = vrot.lane.b32.xlu0 %v985, 127
        %v1019 = vpop.permute.xlu0 %1018
        %1020 = vrot.lane.b32.xlu0 %v986, 127
        %v1021 = vpop.permute.xlu0 %1020
        %1022 = vrot.lane.b32.xlu0 %v987, 127
        %v1023 = vpop.permute.xlu0 %1022
        %1024 = vrot.lane.b32.xlu0 %v988, 127
        %v1025 = vpop.permute.xlu0 %1024
        %1026 = vrot.lane.b32.xlu0 %v989, 127
        %v1027 = vpop.permute.xlu0 %1026
        %1028 = vrot.lane.b32.xlu0 %v990, 127
        %v1029 = vpop.permute.xlu0 %1028
        %1030 = vrot.lane.b32.xlu0 %v991, 127
        %v1031 = vpop.permute.xlu0 %1030
        %1032 = vrot.lane.b32.xlu0 %v992, 127
        %v1033 = vpop.permute.xlu0 %1032
        %1034 = vrot.lane.b32.xlu0 %v993, 127
        %v1035 = vpop.permute.xlu0 %1034
        %v1036 = vsel %vm478, %v1009, %v1011
        %v1037 = vsel %vm478, %v1011, %v1013
        %v1038 = vsel %vm478, %v1013, %v1015
        %v1039 = vsel %vm478, %v1015, %v1017
        %v1040 = vsel %vm478, %v1017, %v1019
        %v1041 = vsel %vm478, %v1019, %v1021
        %v1042 = vsel %vm478, %v1023, %v1025
        %v1043 = vsel %vm478, %v1025, %v1027
        %v1044 = vsel %vm478, %v1027, %v1029
        %v1045 = vsel %vm478, %v1029, %v1031
        %v1046 = vsel %vm478, %v1031, %v1033
        %v1047 = vsel %vm478, %v1033, %v1035
        %v1062 = vmax.f32 %v980, %v1036
        %v1063 = vmax.f32 %v981, %v1037
        %v1064 = vmax.f32 %v982, %v1038
        %v1065 = vmax.f32 %v983, %v1039
        %v1066 = vmax.f32 %v984, %v1040
        %v1067 = vmax.f32 %v985, %v1041
        %v1068 = vmax.f32 %v986, %v1021
        %v1069 = vmax.f32 %v987, %v1042
        %v1070 = vmax.f32 %v988, %v1043
        %v1071 = vmax.f32 %v989, %v1044
        %v1072 = vmax.f32 %v990, %v1045
        %v1073 = vmax.f32 %v991, %v1046
        %v1074 = vmax.f32 %v992, %v1047
        %v1075 = vmax.f32 %v993, %v1035
        %1090 = vrot.lane.b32.xlu0 %v1062, 98
        %v1091 = vpop.permute.xlu0 %1090
        %1092 = vrot.lane.b32.xlu0 %v1063, 98
        %v1093 = vpop.permute.xlu0 %1092
        %1094 = vrot.lane.b32.xlu0 %v1064, 98
        %v1095 = vpop.permute.xlu0 %1094
        %1096 = vrot.lane.b32.xlu0 %v1065, 98
        %v1097 = vpop.permute.xlu0 %1096
        %1098 = vrot.lane.b32.xlu0 %v1066, 98
        %v1099 = vpop.permute.xlu0 %1098
        %1100 = vrot.lane.b32.xlu0 %v1067, 98
        %v1101 = vpop.permute.xlu0 %1100
        %1102 = vrot.lane.b32.xlu0 %v1068, 98
        %v1103 = vpop.permute.xlu0 %1102
        %1104 = vrot.lane.b32.xlu0 %v1069, 98
        %v1105 = vpop.permute.xlu0 %1104
        %1106 = vrot.lane.b32.xlu0 %v1070, 98
        %v1107 = vpop.permute.xlu0 %1106
        %1108 = vrot.lane.b32.xlu0 %v1071, 98
        %v1109 = vpop.permute.xlu0 %1108
        %1110 = vrot.lane.b32.xlu0 %v1072, 98
        %v1111 = vpop.permute.xlu0 %1110
        %1112 = vrot.lane.b32.xlu0 %v1073, 98
        %v1113 = vpop.permute.xlu0 %1112
        %1114 = vrot.lane.b32.xlu0 %v1074, 98
        %v1115 = vpop.permute.xlu0 %1114
        %1116 = vrot.lane.b32.xlu0 %v1075, 98
        %v1117 = vpop.permute.xlu0 %1116
        %v1118 = vsel %vm534, %v1091, %v1093
        %v1119 = vsel %vm534, %v1093, %v1095
        %v1120 = vsel %vm534, %v1095, %v1097
        %v1121 = vsel %vm534, %v1097, %v1099
        %v1122 = vsel %vm534, %v1099, %v1101
        %v1123 = vsel %vm534, %v1101, %v1103
        %v1124 = vsel %vm534, %v1105, %v1107
        %v1125 = vsel %vm534, %v1107, %v1109
        %v1126 = vsel %vm534, %v1109, %v1111
        %v1127 = vsel %vm534, %v1111, %v1113
        %v1128 = vsel %vm534, %v1113, %v1115
        %v1129 = vsel %vm534, %v1115, %v1117
        %v1144 = vmax.f32 %v1062, %v1118
        %v1145 = vmax.f32 %v1063, %v1119
        %v1146 = vmax.f32 %v1064, %v1120
        %v1147 = vmax.f32 %v1065, %v1121
        %v1148 = vmax.f32 %v1066, %v1122
        %v1149 = vmax.f32 %v1067, %v1123
        %v1150 = vmax.f32 %v1068, %v1103
        %v1151 = vmax.f32 %v1069, %v1124
        %v1152 = vmax.f32 %v1070, %v1125
        %v1153 = vmax.f32 %v1071, %v1126
        %v1154 = vmax.f32 %v1072, %v1127
        %v1155 = vmax.f32 %v1073, %v1128
        %v1156 = vmax.f32 %v1074, %v1129
        %v1157 = vmax.f32 %v1075, %v1117
        %v1158 = vpack.c.bf16 %v1151, %v1144
        %v1159 = vpack.c.bf16 %v1152, %v1145
        %v1160 = vpack.c.bf16 %v1153, %v1146
        %v1161 = vpack.c.bf16 %v1154, %v1147
        %v1162 = vpack.c.bf16 %v1155, %v1148
        %v1163 = vpack.c.bf16 %v1156, %v1149
        %v1164 = vpack.c.bf16 %v1157, %v1150
        %v1165 = vld [vmem:[#allocation2] sm:$0xff]
        %v1166 = vld [vmem:[#allocation2 + $0x8] sm:$0xff]
        %v1167 = vld [vmem:[#allocation2 + $0x10] sm:$0xff]
        %v1168 = vld [vmem:[#allocation2 + $0x18] sm:$0xff]
        %v1169 = vld [vmem:[#allocation2 + $0x20] sm:$0xff]
        %v1170 = vld [vmem:[#allocation2 + $0x28] sm:$0xff]
        %v1171 = vld [vmem:[#allocation2 + $0x30] sm:$0xff]
        %v1172 = vld [vmem:[#allocation2 + $0x38] sm:$0xff]
        %v1173 = vld [vmem:[#allocation2 + $0x40] sm:$0xff]
        %v1174 = vld [vmem:[#allocation2 + $0x48] sm:$0xff]
        %v1175 = vld [vmem:[#allocation2 + $0x50] sm:$0xff]
        %v1176 = vld [vmem:[#allocation2 + $0x58] sm:$0xff]
        %v1177 = vld [vmem:[#allocation2 + $0x60] sm:$0xff]
        %v1178 = vld [vmem:[#allocation2 + $0x68] sm:$0xff]
        %v1179 = vld [vmem:[#allocation2 + $0x70] sm:$0xff]
        %v1180 = vld [vmem:[#allocation2 + $0x78] sm:$0xff]
        %v1181 = vld [vmem:[#allocation2 + $0x80] sm:$0xff]
        %v1182 = vld [vmem:[#allocation2 + $0x88] sm:$0xff]
        %v1183 = vld [vmem:[#allocation2 + $0x90] sm:$0xff]
        %v1184 = vld [vmem:[#allocation2 + $0x98] sm:$0xff]
        %v1185 = vld [vmem:[#allocation2 + $0xa0] sm:$0xff]
        %v1186 = vld [vmem:[#allocation2 + $0xa8] sm:$0xff]
        %v1187 = vld [vmem:[#allocation2 + $0xb0] sm:$0xff]
        %v1188 = vld [vmem:[#allocation2 + $0xb8] sm:$0xff]
        %v1189 = vld [vmem:[#allocation2 + $0xc0] sm:$0xff]
        %v1190 = vld [vmem:[#allocation2 + $0xc8] sm:$0xff]
        %v1191 = vld [vmem:[#allocation2 + $0xd0] sm:$0xff]
        %v1192 = vld [vmem:[#allocation2 + $0xd8] sm:$0xff]
        %v1193 = vld [vmem:[#allocation2 + $0xe0] sm:$0xff]
        %v1194 = vld [vmem:[#allocation2 + $0xe8] sm:$0xff]
        %v1195 = vld [vmem:[#allocation2 + $0xf0] sm:$0xff]
        %v1196 = vld [vmem:[#allocation2 + $0xf8] sm:$0xff]
        %v1197 = vld [vmem:[#allocation2 + $0x100] sm:$0xff]
        %v1198 = vld [vmem:[#allocation2 + $0x108] sm:$0xff]
        %v1199 = vld [vmem:[#allocation2 + $0x110] sm:$0xff]
        %v1200 = vld [vmem:[#allocation2 + $0x118] sm:$0xff]
        %v1201 = vld [vmem:[#allocation2 + $0x120] sm:$0xff]
        %v1202 = vld [vmem:[#allocation2 + $0x128] sm:$0xff]
        %v1203 = vld [vmem:[#allocation2 + $0x130] sm:$0xff]
        %v1204 = vld [vmem:[#allocation2 + $0x138] sm:$0xff]
        %v1205 = vld [vmem:[#allocation2 + $0x140] sm:$0xff]
        %v1206 = vld [vmem:[#allocation2 + $0x148] sm:$0xff]
        %v1207 = vld [vmem:[#allocation2 + $0x150] sm:$0xff]
        %v1208 = vld [vmem:[#allocation2 + $0x158] sm:$0xff]
        %v1209 = vld [vmem:[#allocation2 + $0x160] sm:$0xff]
        %v1210 = vld [vmem:[#allocation2 + $0x168] sm:$0xff]
        %v1211 = vld [vmem:[#allocation2 + $0x170] sm:$0xff]
        %v1212 = vld [vmem:[#allocation2 + $0x178] sm:$0xff]
        %v1213 = vld [vmem:[#allocation2 + $0x180] sm:$0xff]
        %v1214 = vld [vmem:[#allocation2 + $0x188] sm:$0xff]
        %v1215 = vld [vmem:[#allocation2 + $0x190] sm:$0xff]
        %v1216 = vld [vmem:[#allocation2 + $0x198] sm:$0xff]
        %v1217 = vld [vmem:[#allocation2 + $0x1a0] sm:$0xff]
        %v1218 = vld [vmem:[#allocation2 + $0x1a8] sm:$0xff]
        %v1219 = vld [vmem:[#allocation2 + $0x1b0] sm:$0xff]
        %v1220 = vld [vmem:[#allocation2 + $0x1b8] sm:$0xff]
        %v1221 = vld [vmem:[#allocation2 + $0x1c0] sm:$0xff]
        %v1222 = vld [vmem:[#allocation2 + $0x1c8] sm:$0xff]
        %v1223 = vld [vmem:[#allocation2 + $0x1d0] sm:$0xff]
        %v1224 = vld [vmem:[#allocation2 + $0x1d8] sm:$0xff]
        %v1225 = vld [vmem:[#allocation2 + $0x1e0] sm:$0xff]
        %v1226 = vld [vmem:[#allocation2 + $0x1e8] sm:$0xff]
        %v1227 = vld [vmem:[#allocation2 + $0x1f0] sm:$0xff]
        %v1228 = vld [vmem:[#allocation2 + $0x1f8] sm:$0xff]
        %v1229 = vld [vmem:[#allocation2 + $0x200] sm:$0xff]
        %v1230 = vld [vmem:[#allocation2 + $0x208] sm:$0xff]
        %v1231 = vld [vmem:[#allocation2 + $0x210] sm:$0xff]
        %v1232 = vld [vmem:[#allocation2 + $0x218] sm:$0xff]
        %v1233 = vld [vmem:[#allocation2 + $0x220] sm:$0xff]
        %v1234 = vld [vmem:[#allocation2 + $0x228] sm:$0xff]
        %v1235 = vld [vmem:[#allocation2 + $0x230] sm:$0xff]
        %v1236 = vld [vmem:[#allocation2 + $0x238] sm:$0xff]
        %v1237 = vld [vmem:[#allocation2 + $0x240] sm:$0xff]
        %v1238 = vld [vmem:[#allocation2 + $0x248] sm:$0xff]
        %v1239 = vld [vmem:[#allocation2 + $0x250] sm:$0xff]
        %v1240 = vld [vmem:[#allocation2 + $0x258] sm:$0xff]
        %v1241 = vld [vmem:[#allocation2 + $0x260] sm:$0xff]
        %v1242 = vld [vmem:[#allocation2 + $0x268] sm:$0xff]
        %v1243 = vld [vmem:[#allocation2 + $0x270] sm:$0xff]
        %v1244 = vld [vmem:[#allocation2 + $0x278] sm:$0xff]
        %v1245 = vld [vmem:[#allocation2 + $0x280] sm:$0xff]
        %v1246 = vld [vmem:[#allocation2 + $0x288] sm:$0xff]
        %v1247 = vld [vmem:[#allocation2 + $0x290] sm:$0xff]
        %v1248 = vld [vmem:[#allocation2 + $0x298] sm:$0xff]
        %v1249 = vld [vmem:[#allocation2 + $0x2a0] sm:$0xff]
        %v1250 = vld [vmem:[#allocation2 + $0x2a8] sm:$0xff]
        %v1251 = vld [vmem:[#allocation2 + $0x2b0] sm:$0xff]
        %v1252 = vld [vmem:[#allocation2 + $0x2b8] sm:$0xff]
        %v1253 = vld [vmem:[#allocation2 + $0x2c0] sm:$0xff]
        %v1254 = vld [vmem:[#allocation2 + $0x2c8] sm:$0xff]
        %v1255 = vld [vmem:[#allocation2 + $0x2d0] sm:$0xff]
        %v1256 = vld [vmem:[#allocation2 + $0x2d8] sm:$0xff]
        %v1257 = vld [vmem:[#allocation2 + $0x2e0] sm:$0xff]
        %v1258 = vld [vmem:[#allocation2 + $0x2e8] sm:$0xff]
        %v1259 = vld [vmem:[#allocation2 + $0x2f0] sm:$0xff]
        %v1260 = vld [vmem:[#allocation2 + $0x2f8] sm:$0xff]
        %v1261 = vld [vmem:[#allocation2 + $0x300] sm:$0xff]
        %v1262 = vld [vmem:[#allocation2 + $0x308] sm:$0xff]
        %v1263 = vld [vmem:[#allocation2 + $0x310] sm:$0xff]
        %v1264 = vld [vmem:[#allocation2 + $0x318] sm:$0xff]
        %v1265 = vld [vmem:[#allocation2 + $0x320] sm:$0xff]
        %v1367 = vunpack.c.l.b16 %v1165
        %v1368 = vunpack.c.h.b16 %v1165
        %v1369 = vunpack.c.l.b16 %v1166
        %v1370 = vunpack.c.h.b16 %v1166
        %v1371 = vunpack.c.l.b16 %v1167
        %v1372 = vunpack.c.h.b16 %v1167
        %v1373 = vunpack.c.l.b16 %v1168
        %v1374 = vunpack.c.h.b16 %v1168
        %v1375 = vunpack.c.l.b16 %v1169
        %v1376 = vunpack.c.h.b16 %v1169
        %v1377 = vunpack.c.l.b16 %v1170
        %v1378 = vunpack.c.h.b16 %v1170
        %v1379 = vunpack.c.l.b16 %v1171
        %v1380 = vunpack.c.h.b16 %v1171
        %v1381 = vunpack.c.l.b16 %v1172
        %v1382 = vunpack.c.h.b16 %v1172
        %v1383 = vunpack.c.l.b16 %v1173
        %v1384 = vunpack.c.h.b16 %v1173
        %v1385 = vunpack.c.l.b16 %v1174
        %v1386 = vunpack.c.h.b16 %v1174
        %v1387 = vunpack.c.l.b16 %v1175
        %v1388 = vunpack.c.h.b16 %v1175
        %v1389 = vunpack.c.l.b16 %v1176
        %v1390 = vunpack.c.h.b16 %v1176
        %v1391 = vunpack.c.l.b16 %v1177
        %v1392 = vunpack.c.h.b16 %v1177
        %v1393 = vunpack.c.l.b16 %v1178
        %v1394 = vunpack.c.h.b16 %v1178
        %v1395 = vunpack.c.l.b16 %v1179
        %v1396 = vunpack.c.h.b16 %v1179
        %v1397 = vunpack.c.l.b16 %v1180
        %v1398 = vunpack.c.h.b16 %v1180
        %v1399 = vunpack.c.l.b16 %v1181
        %v1400 = vunpack.c.h.b16 %v1181
        %v1401 = vunpack.c.l.b16 %v1182
        %v1402 = vunpack.c.h.b16 %v1182
        %v1403 = vunpack.c.l.b16 %v1183
        %v1404 = vunpack.c.h.b16 %v1183
        %v1405 = vunpack.c.l.b16 %v1184
        %v1406 = vunpack.c.h.b16 %v1184
        %v1407 = vunpack.c.l.b16 %v1185
        %v1408 = vunpack.c.h.b16 %v1185
        %v1409 = vunpack.c.l.b16 %v1186
        %v1410 = vunpack.c.h.b16 %v1186
        %v1411 = vunpack.c.l.b16 %v1187
        %v1412 = vunpack.c.h.b16 %v1187
        %v1413 = vunpack.c.l.b16 %v1188
        %v1414 = vunpack.c.h.b16 %v1188
        %v1415 = vunpack.c.l.b16 %v1189
        %v1416 = vunpack.c.h.b16 %v1189
        %v1417 = vunpack.c.l.b16 %v1190
        %v1418 = vunpack.c.h.b16 %v1190
        %v1419 = vunpack.c.l.b16 %v1191
        %v1420 = vunpack.c.h.b16 %v1191
        %v1421 = vunpack.c.l.b16 %v1192
        %v1422 = vunpack.c.h.b16 %v1192
        %v1423 = vunpack.c.l.b16 %v1193
        %v1424 = vunpack.c.h.b16 %v1193
        %v1425 = vunpack.c.l.b16 %v1194
        %v1426 = vunpack.c.h.b16 %v1194
        %v1427 = vunpack.c.l.b16 %v1195
        %v1428 = vunpack.c.h.b16 %v1195
        %v1429 = vunpack.c.l.b16 %v1196
        %v1430 = vunpack.c.h.b16 %v1196
        %v1431 = vunpack.c.l.b16 %v1197
        %v1432 = vunpack.c.h.b16 %v1197
        %v1433 = vunpack.c.l.b16 %v1198
        %v1434 = vunpack.c.h.b16 %v1198
        %v1435 = vunpack.c.l.b16 %v1199
        %v1436 = vunpack.c.h.b16 %v1199
        %v1437 = vunpack.c.l.b16 %v1200
        %v1438 = vunpack.c.h.b16 %v1200
        %v1439 = vunpack.c.l.b16 %v1201
        %v1440 = vunpack.c.h.b16 %v1201
        %v1441 = vunpack.c.l.b16 %v1202
        %v1442 = vunpack.c.h.b16 %v1202
        %v1443 = vunpack.c.l.b16 %v1203
        %v1444 = vunpack.c.h.b16 %v1203
        %v1445 = vunpack.c.l.b16 %v1204
        %v1446 = vunpack.c.h.b16 %v1204
        %v1447 = vunpack.c.l.b16 %v1205
        %v1448 = vunpack.c.h.b16 %v1205
        %v1449 = vunpack.c.l.b16 %v1206
        %v1450 = vunpack.c.h.b16 %v1206
        %v1451 = vunpack.c.l.b16 %v1207
        %v1452 = vunpack.c.h.b16 %v1207
        %v1453 = vunpack.c.l.b16 %v1208
        %v1454 = vunpack.c.h.b16 %v1208
        %v1455 = vunpack.c.l.b16 %v1209
        %v1456 = vunpack.c.h.b16 %v1209
        %v1457 = vunpack.c.l.b16 %v1210
        %v1458 = vunpack.c.h.b16 %v1210
        %v1459 = vunpack.c.l.b16 %v1211
        %v1460 = vunpack.c.h.b16 %v1211
        %v1461 = vunpack.c.l.b16 %v1212
        %v1462 = vunpack.c.h.b16 %v1212
        %v1463 = vunpack.c.l.b16 %v1213
        %v1464 = vunpack.c.h.b16 %v1213
        %v1465 = vunpack.c.l.b16 %v1214
        %v1466 = vunpack.c.h.b16 %v1214
        %v1467 = vunpack.c.l.b16 %v1215
        %v1468 = vunpack.c.h.b16 %v1215
        %v1469 = vunpack.c.l.b16 %v1216
        %v1470 = vunpack.c.h.b16 %v1216
        %v1471 = vunpack.c.l.b16 %v1217
        %v1472 = vunpack.c.h.b16 %v1217
        %v1473 = vunpack.c.l.b16 %v1218
        %v1474 = vunpack.c.h.b16 %v1218
        %v1475 = vunpack.c.l.b16 %v1219
        %v1476 = vunpack.c.h.b16 %v1219
        %v1477 = vunpack.c.l.b16 %v1220
        %v1478 = vunpack.c.h.b16 %v1220
        %v1479 = vunpack.c.l.b16 %v1221
        %v1480 = vunpack.c.h.b16 %v1221
        %v1481 = vunpack.c.l.b16 %v1222
        %v1482 = vunpack.c.h.b16 %v1222
        %v1483 = vunpack.c.l.b16 %v1223
        %v1484 = vunpack.c.h.b16 %v1223
        %v1485 = vunpack.c.l.b16 %v1224
        %v1486 = vunpack.c.h.b16 %v1224
        %v1487 = vunpack.c.l.b16 %v1225
        %v1488 = vunpack.c.h.b16 %v1225
        %v1489 = vunpack.c.l.b16 %v1226
        %v1490 = vunpack.c.h.b16 %v1226
        %v1491 = vunpack.c.l.b16 %v1227
        %v1492 = vunpack.c.h.b16 %v1227
        %v1493 = vunpack.c.l.b16 %v1228
        %v1494 = vunpack.c.h.b16 %v1228
        %v1495 = vunpack.c.l.b16 %v1229
        %v1496 = vunpack.c.h.b16 %v1229
        %v1497 = vunpack.c.l.b16 %v1230
        %v1498 = vunpack.c.h.b16 %v1230
        %v1499 = vunpack.c.l.b16 %v1231
        %v1500 = vunpack.c.h.b16 %v1231
        %v1501 = vunpack.c.l.b16 %v1232
        %v1502 = vunpack.c.h.b16 %v1232
        %v1503 = vunpack.c.l.b16 %v1233
        %v1504 = vunpack.c.h.b16 %v1233
        %v1505 = vunpack.c.l.b16 %v1234
        %v1506 = vunpack.c.h.b16 %v1234
        %v1507 = vunpack.c.l.b16 %v1235
        %v1508 = vunpack.c.h.b16 %v1235
        %v1509 = vunpack.c.l.b16 %v1236
        %v1510 = vunpack.c.h.b16 %v1236
        %v1511 = vunpack.c.l.b16 %v1237
        %v1512 = vunpack.c.h.b16 %v1237
        %v1513 = vunpack.c.l.b16 %v1238
        %v1514 = vunpack.c.h.b16 %v1238
        %v1515 = vunpack.c.l.b16 %v1239
        %v1516 = vunpack.c.h.b16 %v1239
        %v1517 = vunpack.c.l.b16 %v1240
        %v1518 = vunpack.c.h.b16 %v1240
        %v1519 = vunpack.c.l.b16 %v1241
        %v1520 = vunpack.c.h.b16 %v1241
        %v1521 = vunpack.c.l.b16 %v1242
        %v1522 = vunpack.c.h.b16 %v1242
        %v1523 = vunpack.c.l.b16 %v1243
        %v1524 = vunpack.c.h.b16 %v1243
        %v1525 = vunpack.c.l.b16 %v1244
        %v1526 = vunpack.c.h.b16 %v1244
        %v1527 = vunpack.c.l.b16 %v1245
        %v1528 = vunpack.c.h.b16 %v1245
        %v1529 = vunpack.c.l.b16 %v1246
        %v1530 = vunpack.c.h.b16 %v1246
        %v1531 = vunpack.c.l.b16 %v1247
        %v1532 = vunpack.c.h.b16 %v1247
        %v1533 = vunpack.c.l.b16 %v1248
        %v1534 = vunpack.c.h.b16 %v1248
        %v1535 = vunpack.c.l.b16 %v1249
        %v1536 = vunpack.c.h.b16 %v1249
        %v1537 = vunpack.c.l.b16 %v1250
        %v1538 = vunpack.c.h.b16 %v1250
        %v1539 = vunpack.c.l.b16 %v1251
        %v1540 = vunpack.c.h.b16 %v1251
        %v1541 = vunpack.c.l.b16 %v1252
        %v1542 = vunpack.c.h.b16 %v1252
        %v1543 = vunpack.c.l.b16 %v1253
        %v1544 = vunpack.c.h.b16 %v1253
        %v1545 = vunpack.c.l.b16 %v1254
        %v1546 = vunpack.c.h.b16 %v1254
        %v1547 = vunpack.c.l.b16 %v1255
        %v1548 = vunpack.c.h.b16 %v1255
        %v1549 = vunpack.c.l.b16 %v1256
        %v1550 = vunpack.c.h.b16 %v1256
        %v1551 = vunpack.c.l.b16 %v1257
        %v1552 = vunpack.c.h.b16 %v1257
        %v1553 = vunpack.c.l.b16 %v1258
        %v1554 = vunpack.c.h.b16 %v1258
        %v1555 = vunpack.c.l.b16 %v1259
        %v1556 = vunpack.c.h.b16 %v1259
        %v1557 = vunpack.c.l.b16 %v1260
        %v1558 = vunpack.c.h.b16 %v1260
        %v1559 = vunpack.c.l.b16 %v1261
        %v1560 = vunpack.c.h.b16 %v1261
        %v1561 = vunpack.c.l.b16 %v1262
        %v1562 = vunpack.c.h.b16 %v1262
        %v1563 = vunpack.c.l.b16 %v1263
        %v1564 = vunpack.c.h.b16 %v1263
        %v1565 = vunpack.c.l.b16 %v1264
        %v1566 = vunpack.c.h.b16 %v1264
        %v1567 = vunpack.c.l.b16 %v1265
        %v1568 = vunpack.c.h.b16 %v1265
        %v1569 = vpack.c.b16 %v1369, %v1367
        %v1570 = vpack.c.b16 %v1370, %v1368
        %v1571 = vpack.c.b16 %v1373, %v1371
        %v1572 = vpack.c.b16 %v1374, %v1372
        %v1573 = vpack.c.b16 %v1377, %v1375
        %v1574 = vpack.c.b16 %v1378, %v1376
        %v1575 = vpack.c.b16 %v1381, %v1379
        %v1576 = vpack.c.b16 %v1382, %v1380
        %v1577 = vpack.c.b16 %v1385, %v1383
        %v1578 = vpack.c.b16 %v1386, %v1384
        %v1579 = vpack.c.b16 %v1389, %v1387
        %v1580 = vpack.c.b16 %v1390, %v1388
        %v1581 = vpack.c.b16 %v1393, %v1391
        %v1582 = vpack.c.b16 %v1394, %v1392
        %v1583 = vpack.c.b16 %v1397, %v1395
        %v1584 = vpack.c.b16 %v1398, %v1396
        %v1585 = vpack.c.b16 %v1401, %v1399
        %v1586 = vpack.c.b16 %v1402, %v1400
        %v1587 = vpack.c.b16 %v1405, %v1403
        %v1588 = vpack.c.b16 %v1406, %v1404
        %v1589 = vpack.c.b16 %v1409, %v1407
        %v1590 = vpack.c.b16 %v1410, %v1408
        %v1591 = vpack.c.b16 %v1413, %v1411
        %v1592 = vpack.c.b16 %v1414, %v1412
        %v1593 = vpack.c.b16 %v1417, %v1415
        %v1594 = vpack.c.b16 %v1418, %v1416
        %v1595 = vpack.c.b16 %v1421, %v1419
        %v1596 = vpack.c.b16 %v1422, %v1420
        %v1597 = vpack.c.b16 %v1425, %v1423
        %v1598 = vpack.c.b16 %v1426, %v1424
        %v1599 = vpack.c.b16 %v1429, %v1427
        %v1600 = vpack.c.b16 %v1430, %v1428
        %v1601 = vpack.c.b16 %v1433, %v1431
        %v1602 = vpack.c.b16 %v1434, %v1432
        %v1603 = vpack.c.b16 %v1437, %v1435
        %v1604 = vpack.c.b16 %v1438, %v1436
        %v1605 = vpack.c.b16 %v1441, %v1439
        %v1606 = vpack.c.b16 %v1442, %v1440
        %v1607 = vpack.c.b16 %v1445, %v1443
        %v1608 = vpack.c.b16 %v1446, %v1444
        %v1609 = vpack.c.b16 %v1449, %v1447
        %v1610 = vpack.c.b16 %v1450, %v1448
        %v1611 = vpack.c.b16 %v1453, %v1451
        %v1612 = vpack.c.b16 %v1454, %v1452
        %v1613 = vpack.c.b16 %v1457, %v1455
        %v1614 = vpack.c.b16 %v1458, %v1456
        %v1615 = vpack.c.b16 %v1461, %v1459
        %v1616 = vpack.c.b16 %v1462, %v1460
        %v1617 = vpack.c.b16 %v1465, %v1463
        %v1618 = vpack.c.b16 %v1466, %v1464
        %v1619 = vpack.c.b16 %v1469, %v1467
        %v1620 = vpack.c.b16 %v1470, %v1468
        %v1621 = vpack.c.b16 %v1473, %v1471
        %v1622 = vpack.c.b16 %v1474, %v1472
        %v1623 = vpack.c.b16 %v1477, %v1475
        %v1624 = vpack.c.b16 %v1478, %v1476
        %v1625 = vpack.c.b16 %v1481, %v1479
        %v1626 = vpack.c.b16 %v1482, %v1480
        %v1627 = vpack.c.b16 %v1485, %v1483
        %v1628 = vpack.c.b16 %v1486, %v1484
        %v1629 = vpack.c.b16 %v1489, %v1487
        %v1630 = vpack.c.b16 %v1490, %v1488
        %v1631 = vpack.c.b16 %v1493, %v1491
        %v1632 = vpack.c.b16 %v1494, %v1492
        %v1633 = vpack.c.b16 %v1497, %v1495
        %v1634 = vpack.c.b16 %v1498, %v1496
        %v1635 = vpack.c.b16 %v1501, %v1499
        %v1636 = vpack.c.b16 %v1502, %v1500
        %v1637 = vpack.c.b16 %v1505, %v1503
        %v1638 = vpack.c.b16 %v1506, %v1504
        %v1639 = vpack.c.b16 %v1509, %v1507
        %v1640 = vpack.c.b16 %v1510, %v1508
        %v1641 = vpack.c.b16 %v1513, %v1511
        %v1642 = vpack.c.b16 %v1514, %v1512
        %v1643 = vpack.c.b16 %v1517, %v1515
        %v1644 = vpack.c.b16 %v1518, %v1516
        %v1645 = vpack.c.b16 %v1521, %v1519
        %v1646 = vpack.c.b16 %v1522, %v1520
        %v1647 = vpack.c.b16 %v1525, %v1523
        %v1648 = vpack.c.b16 %v1526, %v1524
        %v1649 = vpack.c.b16 %v1529, %v1527
        %v1650 = vpack.c.b16 %v1530, %v1528
        %v1651 = vpack.c.b16 %v1533, %v1531
        %v1652 = vpack.c.b16 %v1534, %v1532
        %v1653 = vpack.c.b16 %v1537, %v1535
        %v1654 = vpack.c.b16 %v1538, %v1536
        %v1655 = vpack.c.b16 %v1541, %v1539
        %v1656 = vpack.c.b16 %v1542, %v1540
        %v1657 = vpack.c.b16 %v1545, %v1543
        %v1658 = vpack.c.b16 %v1546, %v1544
        %v1659 = vpack.c.b16 %v1549, %v1547
        %v1660 = vpack.c.b16 %v1550, %v1548
        %v1661 = vpack.c.b16 %v1553, %v1551
        %v1662 = vpack.c.b16 %v1554, %v1552
        %v1663 = vpack.c.b16 %v1557, %v1555
        %v1664 = vpack.c.b16 %v1558, %v1556
        %v1665 = vpack.c.b16 %v1561, %v1559
        %v1666 = vpack.c.b16 %v1562, %v1560
        %v1667 = vpack.c.b16 %v1565, %v1563
        %v1668 = vpack.c.b16 %v1566, %v1564
        %v1669 = vpack.c.b16 %v1567, %v1567
        %v1670 = vpack.c.b16 %v1568, %v1568
        %vm1771 = vcmask 318464
        %v1773 = vsel %vm1771, %v1164, 0
        %v1775 = vsel %vm717, 4294967295, 65535
        %v1776 = vsel %vm725, %v1775, 0
        %v1778 = vand.u32 %v1669, %v1776
        %v1781 = vand.u32 %v1670, %v1776
        %1783 = vmatprep.subr.bf16.mxu0 %v1570
        %1784 = vmatpush1.bf16.msra.mxu0 %v1569
        %1785 = vmatprep.subr.bf16.mxu0 %v1572
        %1786 = vmatpush1.bf16.msra.mxu0 %v1571
        %1787 = vmatprep.subr.bf16.mxu0 %v1574
        %1788 = vmatpush1.bf16.msra.mxu0 %v1573
        %1789 = vmatprep.subr.bf16.mxu0 %v1576
        %1790 = vmatpush1.bf16.msra.mxu0 %v1575
        %1791 = vmatprep.subr.bf16.mxu0 %v1578
        %1792 = vmatpush1.bf16.msra.mxu0 %v1577
        %1793 = vmatprep.subr.bf16.mxu0 %v1580
        %1794 = vmatpush1.bf16.msra.mxu0 %v1579
        %1795 = vmatprep.subr.bf16.mxu0 %v1582
        %1796 = vmatpush1.bf16.msra.mxu0 %v1581
        %1797 = vmatprep.subr.bf16.mxu0 %v1584
        %1798 = vmatpush1.bf16.msra.mxu0 %v1583
        %1799 = vmatprep.subr.bf16.mxu0 %v1586
        %1800 = vmatpush1.bf16.msra.mxu0 %v1585
        %1801 = vmatprep.subr.bf16.mxu0 %v1588
        %1802 = vmatpush1.bf16.msra.mxu0 %v1587
        %1803 = vmatprep.subr.bf16.mxu0 %v1590
        %1804 = vmatpush1.bf16.msra.mxu0 %v1589
        %1805 = vmatprep.subr.bf16.mxu0 %v1592
        %1806 = vmatpush1.bf16.msra.mxu0 %v1591
        %1807 = vmatprep.subr.bf16.mxu0 %v1594
        %1808 = vmatpush1.bf16.msra.mxu0 %v1593
        %1809 = vmatprep.subr.bf16.mxu0 %v1596
        %1810 = vmatpush1.bf16.msra.mxu0 %v1595
        %1811 = vmatprep.subr.bf16.mxu0 %v1598
        %1812 = vmatpush1.bf16.msra.mxu0 %v1597
        %1813 = vmatprep.subr.bf16.mxu0 %v1600
        %1814 = vmatpush1.bf16.msra.mxu0 %v1599
        %1815 = vmatprep.mubr.bf16.mxu0 %v1159
        %1816 = vmatmul.mubr.bf16.gmra.mrb[0].mxu0 %v1158
        %v1817 = vpop.f32.mrb[0].mxu0
        %v1818 = vadd.f32 0.0, %v1817
        %v1819 = vpop.f32.mrb[0].mxu0
        %v1820 = vadd.f32 0.0, %v1819
        %v1821 = vpop.f32.mrb[0].mxu0
        %v1822 = vadd.f32 0.0, %v1821
        %v1823 = vpop.f32.mrb[0].mxu0
        %v1824 = vadd.f32 0.0, %v1823
        %1825 = vdwg.mxu0
        %1826 = vmatprep.subr.bf16.mxu0 %v1602
        %1827 = vmatpush1.bf16.msra.mxu0 %v1601
        %1828 = vmatprep.subr.bf16.mxu0 %v1604
        %1829 = vmatpush1.bf16.msra.mxu0 %v1603
        %1830 = vmatprep.subr.bf16.mxu0 %v1606
        %1831 = vmatpush1.bf16.msra.mxu0 %v1605
        %1832 = vmatprep.subr.bf16.mxu0 %v1608
        %1833 = vmatpush1.bf16.msra.mxu0 %v1607
        %1834 = vmatprep.subr.bf16.mxu0 %v1610
        %1835 = vmatpush1.bf16.msra.mxu0 %v1609
        %1836 = vmatprep.subr.bf16.mxu0 %v1612
        %1837 = vmatpush1.bf16.msra.mxu0 %v1611
        %1838 = vmatprep.subr.bf16.mxu0 %v1614
        %1839 = vmatpush1.bf16.msra.mxu0 %v1613
        %1840 = vmatprep.subr.bf16.mxu0 %v1616
        %1841 = vmatpush1.bf16.msra.mxu0 %v1615
        %1842 = vmatprep.subr.bf16.mxu0 %v1618
        %1843 = vmatpush1.bf16.msra.mxu0 %v1617
        %1844 = vmatprep.subr.bf16.mxu0 %v1620
        %1845 = vmatpush1.bf16.msra.mxu0 %v1619
        %1846 = vmatprep.subr.bf16.mxu0 %v1622
        %1847 = vmatpush1.bf16.msra.mxu0 %v1621
        %1848 = vmatprep.subr.bf16.mxu0 %v1624
        %1849 = vmatpush1.bf16.msra.mxu0 %v1623
        %1850 = vmatprep.subr.bf16.mxu0 %v1626
        %1851 = vmatpush1.bf16.msra.mxu0 %v1625
        %1852 = vmatprep.subr.bf16.mxu0 %v1628
        %1853 = vmatpush1.bf16.msra.mxu0 %v1627
        %1854 = vmatprep.subr.bf16.mxu0 %v1630
        %1855 = vmatpush1.bf16.msra.mxu0 %v1629
        %1856 = vmatprep.subr.bf16.mxu0 %v1632
        %1857 = vmatpush1.bf16.msra.mxu0 %v1631
        %1858 = vmatprep.mubr.bf16.mxu0 %v1161
        %1859 = vmatmul.mubr.bf16.gmra.mrb[0].mxu0 %v1160
        %v1860 = vpop.f32.mrb[0].mxu0
        %v1861 = vadd.f32 %v1818, %v1860
        %v1862 = vpop.f32.mrb[0].mxu0
        %v1863 = vadd.f32 %v1820, %v1862
        %v1864 = vpop.f32.mrb[0].mxu0
        %v1865 = vadd.f32 %v1822, %v1864
        %v1866 = vpop.f32.mrb[0].mxu0
        %v1867 = vadd.f32 %v1824, %v1866
        %1868 = vdwg.mxu0
        %1869 = vmatprep.subr.bf16.mxu0 %v1634
        %1870 = vmatpush1.bf16.msra.mxu0 %v1633
        %1871 = vmatprep.subr.bf16.mxu0 %v1636
        %1872 = vmatpush1.bf16.msra.mxu0 %v1635
        %1873 = vmatprep.subr.bf16.mxu0 %v1638
        %1874 = vmatpush1.bf16.msra.mxu0 %v1637
        %1875 = vmatprep.subr.bf16.mxu0 %v1640
        %1876 = vmatpush1.bf16.msra.mxu0 %v1639
        %1877 = vmatprep.subr.bf16.mxu0 %v1642
        %1878 = vmatpush1.bf16.msra.mxu0 %v1641
        %1879 = vmatprep.subr.bf16.mxu0 %v1644
        %1880 = vmatpush1.bf16.msra.mxu0 %v1643
        %1881 = vmatprep.subr.bf16.mxu0 %v1646
        %1882 = vmatpush1.bf16.msra.mxu0 %v1645
        %1883 = vmatprep.subr.bf16.mxu0 %v1648
        %1884 = vmatpush1.bf16.msra.mxu0 %v1647
        %1885 = vmatprep.subr.bf16.mxu0 %v1650
        %1886 = vmatpush1.bf16.msra.mxu0 %v1649
        %1887 = vmatprep.subr.bf16.mxu0 %v1652
        %1888 = vmatpush1.bf16.msra.mxu0 %v1651
        %1889 = vmatprep.subr.bf16.mxu0 %v1654
        %1890 = vmatpush1.bf16.msra.mxu0 %v1653
        %1891 = vmatprep.subr.bf16.mxu0 %v1656
        %1892 = vmatpush1.bf16.msra.mxu0 %v1655
        %1893 = vmatprep.subr.bf16.mxu0 %v1658
        %1894 = vmatpush1.bf16.msra.mxu0 %v1657
        %1895 = vmatprep.subr.bf16.mxu0 %v1660
        %1896 = vmatpush1.bf16.msra.mxu0 %v1659
        %1897 = vmatprep.subr.bf16.mxu0 %v1662
        %1898 = vmatpush1.bf16.msra.mxu0 %v1661
        %1899 = vmatprep.subr.bf16.mxu0 %v1664
        %1900 = vmatpush1.bf16.msra.mxu0 %v1663
        %1901 = vmatprep.mubr.bf16.mxu0 %v1163
        %1902 = vmatmul.mubr.bf16.gmra.mrb[0].mxu0 %v1162
        %v1903 = vpop.f32.mrb[0].mxu0
        %v1904 = vadd.f32 %v1861, %v1903
        %v1905 = vpop.f32.mrb[0].mxu0
        %v1906 = vadd.f32 %v1863, %v1905
        %v1907 = vpop.f32.mrb[0].mxu0
        %v1908 = vadd.f32 %v1865, %v1907
        %v1909 = vpop.f32.mrb[0].mxu0
        %v1910 = vadd.f32 %v1867, %v1909
        %1911 = vdwg.mxu0
        %1912 = vmatprep.subr.bf16.mxu0 %v1666
        %1913 = vmatpush1.bf16.msra.mxu0 %v1665
        %1914 = vmatprep.subr.bf16.mxu0 %v1668
        %1915 = vmatpush1.bf16.msra.mxu0 %v1667
        %1916 = vmatprep.subr.bf16.mxu0 %v1781
        %1917 = vmatpush1.bf16.msra.mxu0 %v1778
        %1918 = vmatprep.subr.bf16.mxu0 0
        %1919 = vmatpush1.bf16.msra.mxu0 0
        %1920 = vmatprep.subr.bf16.mxu0 0
        %1921 = vmatpush1.bf16.msra.mxu0 0
        %1922 = vmatprep.subr.bf16.mxu0 0
        %1923 = vmatpush1.bf16.msra.mxu0 0
        %1924 = vmatprep.subr.bf16.mxu0 0
        %1925 = vmatpush1.bf16.msra.mxu0 0
        %1926 = vmatprep.subr.bf16.mxu0 0
        %1927 = vmatpush1.bf16.msra.mxu0 0
        %1928 = vmatprep.subr.bf16.mxu0 0
        %1929 = vmatpush1.bf16.msra.mxu0 0
        %1930 = vmatprep.subr.bf16.mxu0 0
        %1931 = vmatpush1.bf16.msra.mxu0 0
        %1932 = vmatprep.subr.bf16.mxu0 0
        %1933 = vmatpush1.bf16.msra.mxu0 0
        %1934 = vmatprep.subr.bf16.mxu0 0
        %1935 = vmatpush1.bf16.msra.mxu0 0
        %1936 = vmatprep.subr.bf16.mxu0 0
        %1937 = vmatpush1.bf16.msra.mxu0 0
        %1938 = vmatprep.subr.bf16.mxu0 0
        %1939 = vmatpush1.bf16.msra.mxu0 0
        %1940 = vmatprep.subr.bf16.mxu0 0
        %1941 = vmatpush1.bf16.msra.mxu0 0
        %1942 = vmatprep.subr.bf16.mxu0 0
        %1943 = vmatpush1.bf16.msra.mxu0 0
        %1944 = vmatprep.mubr.bf16.mxu0 0
        %1945 = vmatmul.mubr.bf16.gmra.mrb[0].mxu0 %v1773
        %v1946 = vpop.f32.mrb[0].mxu0
        %v1947 = vadd.f32 %v1904, %v1946
        %v1948 = vpop.f32.mrb[0].mxu0
        %v1949 = vadd.f32 %v1906, %v1948
        %v1950 = vpop.f32.mrb[0].mxu0
        %v1951 = vadd.f32 %v1908, %v1950
        %v1952 = vpop.f32.mrb[0].mxu0
        %v1953 = vadd.f32 %v1910, %v1952
        %1954 = vdwg.mxu0
        %v1959 = vrot.slane %v1947, 6
        %v1960 = vrot.slane %v1949, 6
        %v1961 = vrot.slane %v1951, 6
        %v1962 = vsel %vm709, %v1959, %v1961
        %v1963 = vrot.slane %v1953, 6
        %v1964 = vsel %vm709, %v1960, %v1963
        %1965 = vrot.lane.b32.xlu0 %v1959, 127
        %v1966 = vpop.permute.xlu0 %1965
        %1967 = vrot.lane.b32.xlu0 %v1960, 127
        %v1968 = vpop.permute.xlu0 %1967
        %1969 = vrot.lane.b32.xlu0 %v1962, 127
        %v1970 = vpop.permute.xlu0 %1969
        %1971 = vrot.lane.b32.xlu0 %v1964, 127
        %v1972 = vpop.permute.xlu0 %1971
        %v1973 = vsel %vm478, %v1966, %v1968
        %v1974 = vsel %vm478, %v1970, %v1972
        %v1979 = vrot.slane %v1947, 4
        %v1980 = vrot.slane %v1949, 4
        %v1981 = vrot.slane %v1951, 4
        %v1982 = vsel %vm725, %v1979, %v1981
        %v1983 = vrot.slane %v1953, 4
        %v1984 = vsel %vm725, %v1980, %v1983
        %1985 = vrot.lane.b32.xlu0 %v1979, 126
        %v1986 = vpop.permute.xlu0 %1985
        %1987 = vrot.lane.b32.xlu0 %v1980, 126
        %v1988 = vpop.permute.xlu0 %1987
        %1989 = vrot.lane.b32.xlu0 %v1982, 126
        %v1990 = vpop.permute.xlu0 %1989
        %1991 = vrot.lane.b32.xlu0 %v1984, 126
        %v1992 = vpop.permute.xlu0 %1991
        %v1993 = vsel %vm506, %v1986, %v1988
        %v1994 = vsel %vm506, %v1990, %v1992
        %v1999 = vrot.slane %v1947, 2
        %v2000 = vrot.slane %v1949, 2
        %v2001 = vrot.slane %v1951, 2
        %v2002 = vsel %vm741, %v1999, %v2001
        %v2003 = vrot.slane %v1953, 2
        %v2004 = vsel %vm741, %v2000, %v2003
        %2005 = vrot.lane.b32.xlu0 %v1999, 112
        %v2006 = vpop.permute.xlu0 %2005
        %2007 = vrot.lane.b32.xlu0 %v2000, 112
        %v2008 = vpop.permute.xlu0 %2007
        %2009 = vrot.lane.b32.xlu0 %v2002, 112
        %v2010 = vpop.permute.xlu0 %2009
        %2011 = vrot.lane.b32.xlu0 %v2004, 112
        %v2012 = vpop.permute.xlu0 %2011
        %vm2013 = vcmask 916480
        %v2014 = vsel %vm2013, %v2006, %v2008
        %v2015 = vsel %vm2013, %v2010, %v2012
        %2020 = vrot.lane.b32.xlu0 %v1947, 111
        %v2021 = vpop.permute.xlu0 %2020
        %2022 = vrot.lane.b32.xlu0 %v1949, 111
        %v2023 = vpop.permute.xlu0 %2022
        %2024 = vrot.lane.b32.xlu0 %v1951, 111
        %v2025 = vpop.permute.xlu0 %2024
        %2026 = vrot.lane.b32.xlu0 %v1953, 111
        %v2027 = vpop.permute.xlu0 %2026
        %vm2028 = vcmask 908288
        %v2029 = vsel %vm2028, %v2021, %v2023
        %v2030 = vsel %vm2028, %v2025, %v2027
        %2035 = vrot.lane.b32.xlu0 %v1959, 110
        %v2036 = vpop.permute.xlu0 %2035
        %2037 = vrot.lane.b32.xlu0 %v1960, 110
        %v2038 = vpop.permute.xlu0 %2037
        %2039 = vrot.lane.b32.xlu0 %v1962, 110
        %v2040 = vpop.permute.xlu0 %2039
        %2041 = vrot.lane.b32.xlu0 %v1964, 110
        %v2042 = vpop.permute.xlu0 %2041
        %vm2043 = vcmask 900096
        %v2044 = vsel %vm2043, %v2036, %v2038
        %v2045 = vsel %vm2043, %v2040, %v2042
        %2050 = vrot.lane.b32.xlu0 %v1979, 96
        %v2051 = vpop.permute.xlu0 %2050
        %2052 = vrot.lane.b32.xlu0 %v1980, 96
        %v2053 = vpop.permute.xlu0 %2052
        %2054 = vrot.lane.b32.xlu0 %v1982, 96
        %v2055 = vpop.permute.xlu0 %2054
        %2056 = vrot.lane.b32.xlu0 %v1984, 96
        %v2057 = vpop.permute.xlu0 %2056
        %v2058 = vsel %vm590, %v2051, %v2053
        %v2059 = vsel %vm590, %v2055, %v2057
        %2064 = vrot.lane.b32.xlu0 %v1999, 95
        %v2065 = vpop.permute.xlu0 %2064
        %2066 = vrot.lane.b32.xlu0 %v2000, 95
        %v2067 = vpop.permute.xlu0 %2066
        %2068 = vrot.lane.b32.xlu0 %v2002, 95
        %v2069 = vpop.permute.xlu0 %2068
        %2070 = vrot.lane.b32.xlu0 %v2004, 95
        %v2071 = vpop.permute.xlu0 %2070
        %vm2072 = vcmask 777216
        %v2073 = vsel %vm2072, %v2065, %v2067
        %v2074 = vsel %vm2072, %v2069, %v2071
        %2079 = vrot.lane.b32.xlu0 %v1947, 94
        %v2080 = vpop.permute.xlu0 %2079
        %2081 = vrot.lane.b32.xlu0 %v1949, 94
        %v2082 = vpop.permute.xlu0 %2081
        %2083 = vrot.lane.b32.xlu0 %v1951, 94
        %v2084 = vpop.permute.xlu0 %2083
        %2085 = vrot.lane.b32.xlu0 %v1953, 94
        %v2086 = vpop.permute.xlu0 %2085
        %vm2087 = vcmask 769024
        %v2088 = vsel %vm2087, %v2080, %v2082
        %v2089 = vsel %vm2087, %v2084, %v2086
        %v2094 = vsel %vm709, %v1951, %v1973
        %v2095 = vsel %vm709, %v1953, %v1968
        %v2096 = vsel %vm725, %v1974, %v1993
        %v2097 = vsel %vm725, %v1972, %v1988
        %v2098 = vsel %vm741, %v1994, %v2014
        %v2099 = vsel %vm741, %v1992, %v2008
        %v2100 = vsel %vm709, %v2030, %v2044
        %v2101 = vsel %vm709, %v2027, %v2038
        %v2102 = vsel %vm725, %v2045, %v2058
        %v2103 = vsel %vm725, %v2042, %v2053
        %v2104 = vsel %vm741, %v2059, %v2073
        %v2105 = vsel %vm741, %v2057, %v2067
        %v2106 = vpack.c.bf16 %v2094, %v1947
        %v2107 = vpack.c.bf16 %v2095, %v1949
        %v2108 = vpack.c.bf16 %v2098, %v2096
        %v2109 = vpack.c.bf16 %v2099, %v2097
        %v2110 = vpack.c.bf16 %v2029, %v2015
        %v2111 = vpack.c.bf16 %v2023, %v2012
        %v2112 = vpack.c.bf16 %v2102, %v2100
        %v2113 = vpack.c.bf16 %v2103, %v2101
        %v2114 = vpack.c.bf16 %v2074, %v2104
        %v2115 = vpack.c.bf16 %v2071, %v2105
        %v2116 = vpack.c.bf16 %v2089, %v2088
        %v2117 = vpack.c.bf16 %v2086, %v2082
        %v2118 = vld [vmem:[%s3] sm:$0xf]
        %v2119 = vld [vmem:[%s3 + $0x4] sm:$0xf]
        %v2120 = vld [vmem:[%s4] sm:$0xff]
        %v2121 = vld [vmem:[%s4 + $0x8] sm:$0xff]
        %2123 = vset.pattern.permute.xlu0 0
        %2124 = vperm.xlu0 %2123, %v2120
        %v2125 = vpop.permute.xlu0 %2124
        %2128 = vset.pattern.permute.xlu0 0
        %2129 = vperm.xlu0 %2128, %v2121
        %v2130 = vpop.permute.xlu0 %2129
        %v2134 = vunpack.c.l.b16 %v2118
        %v2135 = vunpack.c.l.b16 %v2119
        %v2136 = vpack.c.b16 %v2135, %v2134
        %vm2137 = vcmask 736256
        %v2139 = vsel %vm2137, %v2136, 0
        %v2142 = vsel %vm733, %v2116, 0
        %v2145 = vsel %vm733, %v2117, 0
        %2147 = vmatprep.subr.bf16.mxu0 %v2107
        %2148 = vmatpush1.bf16.msra.mxu0 %v2106
        %2149 = vmatprep.subr.bf16.mxu0 %v2109
        %2150 = vmatpush1.bf16.msra.mxu0 %v2108
        %2151 = vmatprep.subr.bf16.mxu0 %v2111
        %2152 = vmatpush1.bf16.msra.mxu0 %v2110
        %2153 = vmatprep.subr.bf16.mxu0 %v2113
        %2154 = vmatpush1.bf16.msra.mxu0 %v2112
        %2155 = vmatprep.subr.bf16.mxu0 %v2115
        %2156 = vmatpush1.bf16.msra.mxu0 %v2114
        %2157 = vmatprep.subr.bf16.mxu0 %v2145
        %2158 = vmatpush1.bf16.msra.mxu0 %v2142
        %2159 = vmatprep.subr.bf16.mxu0 0
        %2160 = vmatpush1.bf16.msra.mxu0 0
        %2161 = vmatprep.subr.bf16.mxu0 0
        %2162 = vmatpush1.bf16.msra.mxu0 0
        %2163 = vmatprep.subr.bf16.mxu0 0
        %2164 = vmatpush1.bf16.msra.mxu0 0
        %2165 = vmatprep.subr.bf16.mxu0 0
        %2166 = vmatpush1.bf16.msra.mxu0 0
        %2167 = vmatprep.subr.bf16.mxu0 0
        %2168 = vmatpush1.bf16.msra.mxu0 0
        %2169 = vmatprep.subr.bf16.mxu0 0
        %2170 = vmatpush1.bf16.msra.mxu0 0
        %2171 = vmatprep.subr.bf16.mxu0 0
        %2172 = vmatpush1.bf16.msra.mxu0 0
        %2173 = vmatprep.subr.bf16.mxu0 0
        %2174 = vmatpush1.bf16.msra.mxu0 0
        %2175 = vmatprep.subr.bf16.mxu0 0
        %2176 = vmatpush1.bf16.msra.mxu0 0
        %2177 = vmatprep.subr.bf16.mxu0 0
        %2178 = vmatpush1.bf16.msra.mxu0 0
        %2179 = vmatprep.mubr.bf16.mxu0 0
        %2180 = vmatmul.mubr.bf16.gmra.mrb[0].mxu0 %v2139
        %v2181 = vpop.f32.mrb[0].mxu0
        %v2182 = vadd.f32 %v2125, %v2181
        %v2183 = vpop.f32.mrb[0].mxu0
        %v2184 = vadd.f32 %v2125, %v2183
        %v2185 = vpop.f32.mrb[0].mxu0
        %v2186 = vadd.f32 %v2130, %v2185
        %v2187 = vpop.f32.mrb[0].mxu0
        %v2188 = vadd.f32 %v2130, %v2187
        %2189 = vdwg.mxu0
        %v2190 = vmax.f32 %v2182, 0.0
        %v2191 = vmax.f32 %v2184, 0.0
        %v2192 = vmax.f32 %v2186, 0.0
        %v2193 = vmax.f32 %v2188, 0.0
        %2198 = vrot.lane.b32.xlu0 %v2190, 127
        %v2199 = vpop.permute.xlu0 %2198
        %2200 = vrot.lane.b32.xlu0 %v2191, 127
        %v2201 = vpop.permute.xlu0 %2200
        %2202 = vrot.lane.b32.xlu0 %v2192, 127
        %v2203 = vpop.permute.xlu0 %2202
        %2204 = vrot.lane.b32.xlu0 %v2193, 127
        %v2205 = vpop.permute.xlu0 %2204
        %v2206 = vsel %vm478, %v2199, %v2201
        %v2207 = vsel %vm478, %v2203, %v2205
        %v2212 = vmax.f32 %v2190, %v2206
        %v2213 = vmax.f32 %v2191, %v2201
        %v2214 = vmax.f32 %v2192, %v2207
        %v2215 = vmax.f32 %v2193, %v2205
        %2220 = vrot.lane.b32.xlu0 %v2212, 112
        %v2221 = vpop.permute.xlu0 %2220
        %2222 = vrot.lane.b32.xlu0 %v2213, 112
        %v2223 = vpop.permute.xlu0 %2222
        %2224 = vrot.lane.b32.xlu0 %v2214, 112
        %v2225 = vpop.permute.xlu0 %2224
        %2226 = vrot.lane.b32.xlu0 %v2215, 112
        %v2227 = vpop.permute.xlu0 %2226
        %v2228 = vsel %vm2013, %v2221, %v2223
        %v2229 = vsel %vm2013, %v2225, %v2227
        %v2234 = vmax.f32 %v2212, %v2228
        %v2235 = vmax.f32 %v2213, %v2223
        %v2236 = vmax.f32 %v2214, %v2229
        %v2237 = vmax.f32 %v2215, %v2227
        %v2238 = vpack.c.bf16 %v2236, %v2234
        %v2239 = vpack.c.bf16 %v2237, %v2235
        %v2240 = vld [vmem:[%s8] sm:$0xf]
        %v2241 = vld [vmem:[%s8 + $0x4] sm:$0xf]
        %v2242 = vld [vmem:[%s8 + $0x8] sm:$0xf]
        %v2243 = vld [vmem:[%s8 + $0xc] sm:$0xf]
        %v2244 = vld [vmem:[%s8 + $0x10] sm:$0xf]
        %v2245 = vld [vmem:[%s8 + $0x14] sm:$0xf]
        %v2246 = vld [vmem:[%s8 + $0x18] sm:$0xf]
        %v2247 = vld [vmem:[%s8 + $0x1c] sm:$0xf]
        %v2248 = vld [vmem:[%s8 + $0x20] sm:$0xf]
        %v2249 = vld [vmem:[%s8 + $0x24] sm:$0xf]
        %v2250 = vld [vmem:[%s8 + $0x28] sm:$0xf]
        %v2251 = vld [vmem:[%s8 + $0x2c] sm:$0xf]
        %v2252 = vld [vmem:[%s8 + $0x30] sm:$0xf]
        %v2253 = vld [vmem:[%s8 + $0x34] sm:$0xf]
        %v2254 = vld [vmem:[%s8 + $0x38] sm:$0xf]
        %v2255 = vld [vmem:[%s8 + $0x3c] sm:$0xf]
        %v2256 = vld [vmem:[%s8 + $0x40] sm:$0xf]
        %v2257 = vld [vmem:[%s8 + $0x44] sm:$0xf]
        %v2258 = vld [vmem:[%s8 + $0x48] sm:$0xf]
        %v2259 = vld [vmem:[%s8 + $0x4c] sm:$0xf]
        %v2260 = vld [vmem:[%s8 + $0x50] sm:$0xf]
        %v2261 = vld [vmem:[%s8 + $0x54] sm:$0xf]
        %v2262 = vld [vmem:[%s8 + $0x58] sm:$0xf]
        %v2263 = vld [vmem:[%s8 + $0x5c] sm:$0xf]
        %v2264 = vld [vmem:[%s8 + $0x60] sm:$0xf]
        %v2265 = vld [vmem:[%s8 + $0x64] sm:$0x7]
        %v2292 = vunpack.c.l.b16 %v2240
        %v2293 = vunpack.c.l.b16 %v2241
        %v2294 = vunpack.c.l.b16 %v2242
        %v2295 = vunpack.c.l.b16 %v2243
        %v2296 = vunpack.c.l.b16 %v2244
        %v2297 = vunpack.c.l.b16 %v2245
        %v2298 = vunpack.c.l.b16 %v2246
        %v2299 = vunpack.c.l.b16 %v2247
        %v2300 = vunpack.c.l.b16 %v2248
        %v2301 = vunpack.c.l.b16 %v2249
        %v2302 = vunpack.c.l.b16 %v2250
        %v2303 = vunpack.c.l.b16 %v2251
        %v2304 = vunpack.c.l.b16 %v2252
        %v2305 = vunpack.c.l.b16 %v2253
        %v2306 = vunpack.c.l.b16 %v2254
        %v2307 = vunpack.c.l.b16 %v2255
        %v2308 = vunpack.c.l.b16 %v2256
        %v2309 = vunpack.c.l.b16 %v2257
        %v2310 = vunpack.c.l.b16 %v2258
        %v2311 = vunpack.c.l.b16 %v2259
        %v2312 = vunpack.c.l.b16 %v2260
        %v2313 = vunpack.c.l.b16 %v2261
        %v2314 = vunpack.c.l.b16 %v2262
        %v2315 = vunpack.c.l.b16 %v2263
        %v2316 = vunpack.c.l.b16 %v2264
        %v2317 = vunpack.c.l.b16 %v2265
        %v2318 = vpack.c.b16 %v2293, %v2292
        %v2319 = vpack.c.b16 %v2295, %v2294
        %v2320 = vpack.c.b16 %v2297, %v2296
        %v2321 = vpack.c.b16 %v2299, %v2298
        %v2322 = vpack.c.b16 %v2301, %v2300
        %v2323 = vpack.c.b16 %v2303, %v2302
        %v2324 = vpack.c.b16 %v2305, %v2304
        %v2325 = vpack.c.b16 %v2307, %v2306
        %v2326 = vpack.c.b16 %v2309, %v2308
        %v2327 = vpack.c.b16 %v2311, %v2310
        %v2328 = vpack.c.b16 %v2313, %v2312
        %v2329 = vpack.c.b16 %v2315, %v2314
        %v2330 = vpack.c.b16 %v2317, %v2316
        %vm2343 = vcmask 629760
        %v2345 = vsel %vm2343, %v2239, 0
        %v2347 = vsel %vm741, 4294967295, 65535
        %v2348 = vsel %vm749, %v2347, 0
        %v2350 = vand.u32 %v2330, %v2348
        %2352 = vmatprep.subr.bf16.mxu0 0
        %2353 = vmatpush1.bf16.msra.mxu0 %v2318
        %2354 = vmatprep.subr.bf16.mxu0 0
        %2355 = vmatpush1.bf16.msra.mxu0 %v2319
        %2356 = vmatprep.subr.bf16.mxu0 0
        %2357 = vmatpush1.bf16.msra.mxu0 %v2320
        %2358 = vmatprep.subr.bf16.mxu0 0
        %2359 = vmatpush1.bf16.msra.mxu0 %v2321
        %2360 = vmatprep.subr.bf16.mxu0 0
        %2361 = vmatpush1.bf16.msra.mxu0 %v2322
        %2362 = vmatprep.subr.bf16.mxu0 0
        %2363 = vmatpush1.bf16.msra.mxu0 %v2323
        %2364 = vmatprep.subr.bf16.mxu0 0
        %2365 = vmatpush1.bf16.msra.mxu0 %v2324
        %2366 = vmatprep.subr.bf16.mxu0 0
        %2367 = vmatpush1.bf16.msra.mxu0 %v2325
        %2368 = vmatprep.subr.bf16.mxu0 0
        %2369 = vmatpush1.bf16.msra.mxu0 %v2326
        %2370 = vmatprep.subr.bf16.mxu0 0
        %2371 = vmatpush1.bf16.msra.mxu0 %v2327
        %2372 = vmatprep.subr.bf16.mxu0 0
        %2373 = vmatpush1.bf16.msra.mxu0 %v2328
        %2374 = vmatprep.subr.bf16.mxu0 0
        %2375 = vmatpush1.bf16.msra.mxu0 %v2329
        %2376 = vmatprep.subr.bf16.mxu0 0
        %2377 = vmatpush1.bf16.msra.mxu0 %v2350
        %2378 = vmatprep.subr.bf16.mxu0 0
        %2379 = vmatpush1.bf16.msra.mxu0 0
        %2380 = vmatprep.subr.bf16.mxu0 0
        %2381 = vmatpush1.bf16.msra.mxu0 0
        %2382 = vmatprep.subr.bf16.mxu0 0
        %2383 = vmatpush1.bf16.msra.mxu0 0
        %2384 = vmatprep.mubr.bf16.mxu0 %v2345
        %2385 = vmatmul.mubr.bf16.gmra.mrb[0].mxu0 %v2238
        %v2386 = vpop.f32.mrb[0].mxu0
        %v2387 = vadd.f32 0.0, %v2386
        %v2388 = vpop.f32.mrb[0].mxu0
        %v2389 = vpop.f32.mrb[0].mxu0
        %v2390 = vadd.f32 0.0, %v2389
        %v2391 = vpop.f32.mrb[0].mxu0
        %2392 = vdwg.mxu0
        %2395 = vrot.lane.b32.xlu0 %v2387, 127
        %v2396 = vpop.permute.xlu0 %2395
        %2397 = vrot.lane.b32.xlu0 %v2390, 127
        %v2398 = vpop.permute.xlu0 %2397
        %2401 = vrot.lane.b32.xlu0 %v2387, 126
        %v2402 = vpop.permute.xlu0 %2401
        %2403 = vrot.lane.b32.xlu0 %v2390, 126
        %v2404 = vpop.permute.xlu0 %2403
        %2407 = vrot.lane.b32.xlu0 %v2387, 119
        %v2408 = vpop.permute.xlu0 %2407
        %2409 = vrot.lane.b32.xlu0 %v2390, 119
        %v2410 = vpop.permute.xlu0 %2409
        %2413 = vrot.lane.b32.xlu0 %v2387, 118
        %v2414 = vpop.permute.xlu0 %2413
        %2415 = vrot.lane.b32.xlu0 %v2390, 118
        %v2416 = vpop.permute.xlu0 %2415
        %2419 = vrot.lane.b32.xlu0 %v2387, 117
        %v2420 = vpop.permute.xlu0 %2419
        %2421 = vrot.lane.b32.xlu0 %v2390, 117
        %v2422 = vpop.permute.xlu0 %2421
        %2425 = vrot.lane.b32.xlu0 %v2387, 110
        %v2426 = vpop.permute.xlu0 %2425
        %2427 = vrot.lane.b32.xlu0 %v2390, 110
        %v2428 = vpop.permute.xlu0 %2427
        %2431 = vrot.lane.b32.xlu0 %v2387, 109
        %v2432 = vpop.permute.xlu0 %2431
        %2433 = vrot.lane.b32.xlu0 %v2390, 109
        %v2434 = vpop.permute.xlu0 %2433
        %2437 = vrot.lane.b32.xlu0 %v2387, 108
        %v2438 = vpop.permute.xlu0 %2437
        %2439 = vrot.lane.b32.xlu0 %v2390, 108
        %v2440 = vpop.permute.xlu0 %2439
        %v2443 = vpack.c.bf16 %v2390, %v2387
        %v2444 = vpack.c.bf16 %v2398, %v2396
        %v2445 = vpack.c.bf16 %v2404, %v2402
        %v2446 = vpack.c.bf16 %v2410, %v2408
        %v2447 = vpack.c.bf16 %v2416, %v2414
        %v2448 = vpack.c.bf16 %v2422, %v2420
        %v2449 = vpack.c.bf16 %v2428, %v2426
        %v2450 = vpack.c.bf16 %v2434, %v2432
        %v2451 = vpack.c.bf16 %v2440, %v2438
        %v2452 = vld [vmem:[%s5] sm:$0xff]
        %v2453 = vld [vmem:[%s5 + $0x8] sm:$0xff]
        %v2454 = vld [vmem:[%s5 + $0x10] sm:$0xff]
        %v2455 = vld [vmem:[%s5 + $0x18] sm:$0xff]
        %v2456 = vld [vmem:[%s6] sm:$0xff]
        %v2457 = vld [vmem:[%s6 + $0x8] sm:$0xff]
        %v2458 = vld [vmem:[%s6 + $0x10] sm:$0xff]
        %v2459 = vld [vmem:[%s6 + $0x18] sm:$0xff]
        %2461 = vset.pattern.permute.xlu0 0
        %2462 = vperm.xlu0 %2461, %v2456
        %v2463 = vpop.permute.xlu0 %2462
        %2466 = vset.pattern.permute.xlu0 0
        %2467 = vperm.xlu0 %2466, %v2457
        %v2468 = vpop.permute.xlu0 %2467
        %2471 = vset.pattern.permute.xlu0 0
        %2472 = vperm.xlu0 %2471, %v2458
        %v2473 = vpop.permute.xlu0 %2472
        %2476 = vset.pattern.permute.xlu0 0
        %2477 = vperm.xlu0 %2476, %v2459
        %v2478 = vpop.permute.xlu0 %2477
        %v2484 = vunpack.c.l.b16 %v2452
        %v2485 = vunpack.c.h.b16 %v2452
        %v2486 = vunpack.c.l.b16 %v2453
        %v2487 = vunpack.c.h.b16 %v2453
        %v2488 = vunpack.c.l.b16 %v2454
        %v2489 = vunpack.c.h.b16 %v2454
        %v2490 = vunpack.c.l.b16 %v2455
        %v2491 = vunpack.c.h.b16 %v2455
        %v2492 = vpack.c.b16 %v2486, %v2484
        %v2493 = vpack.c.b16 %v2487, %v2485
        %v2494 = vpack.c.b16 %v2490, %v2488
        %v2495 = vpack.c.b16 %v2491, %v2489
        %vm2498 = vcmask 130048
        %v2500 = vsel %vm2498, %v2493, 0
        %v2503 = vsel %vm2498, %v2495, 0
        %2505 = vmatprep.subr.bf16.mxu0 0
        %2506 = vmatpush1.bf16.msra.mxu0 %v2443
        %2507 = vmatprep.subr.bf16.mxu0 0
        %2508 = vmatpush1.bf16.msra.mxu0 %v2444
        %2509 = vmatprep.subr.bf16.mxu0 0
        %2510 = vmatpush1.bf16.msra.mxu0 %v2445
        %2511 = vmatprep.subr.bf16.mxu0 0
        %2512 = vmatpush1.bf16.msra.mxu0 %v2446
        %2513 = vmatprep.subr.bf16.mxu0 0
        %2514 = vmatpush1.bf16.msra.mxu0 %v2447
        %2515 = vmatprep.subr.bf16.mxu0 0
        %2516 = vmatpush1.bf16.msra.mxu0 %v2448
        %2517 = vmatprep.subr.bf16.mxu0 0
        %2518 = vmatpush1.bf16.msra.mxu0 %v2449
        %2519 = vmatprep.subr.bf16.mxu0 0
        %2520 = vmatpush1.bf16.msra.mxu0 %v2450
        %2521 = vmatprep.subr.bf16.mxu0 0
        %2522 = vmatpush1.bf16.msra.mxu0 %v2451
        %2523 = vmatprep.subr.bf16.mxu0 0
        %2524 = vmatpush1.bf16.msra.mxu0 0
        %2525 = vmatprep.subr.bf16.mxu0 0
        %2526 = vmatpush1.bf16.msra.mxu0 0
        %2527 = vmatprep.subr.bf16.mxu0 0
        %2528 = vmatpush1.bf16.msra.mxu0 0
        %2529 = vmatprep.subr.bf16.mxu0 0
        %2530 = vmatpush1.bf16.msra.mxu0 0
        %2531 = vmatprep.subr.bf16.mxu0 0
        %2532 = vmatpush1.bf16.msra.mxu0 0
        %2533 = vmatprep.subr.bf16.mxu0 0
        %2534 = vmatpush1.bf16.msra.mxu0 0
        %2535 = vmatprep.subr.bf16.mxu0 0
        %2536 = vmatpush1.bf16.msra.mxu0 0
        %2537 = vmatprep.mubr.bf16.mxu0 %v2500
        %2538 = vmatmul.mubr.bf16.gmra.mrb[0].mxu0 %v2492
        %v2539 = vpop.f32.mrb[0].mxu0
        %v2540 = vadd.f32 %v2463, %v2539
        %v2541 = vpop.f32.mrb[0].mxu0
        %v2542 = vpop.f32.mrb[0].mxu0
        %v2543 = vadd.f32 %v2468, %v2542
        %v2544 = vpop.f32.mrb[0].mxu0
        %2545 = vmatprep.mubr.bf16.mxu0 %v2503
        %2546 = vmatmul.mubr.bf16.gmra.mrb[0].mxu0 %v2494
        %v2547 = vpop.f32.mrb[0].mxu0
        %v2548 = vadd.f32 %v2473, %v2547
        %v2549 = vpop.f32.mrb[0].mxu0
        %v2550 = vpop.f32.mrb[0].mxu0
        %v2551 = vadd.f32 %v2478, %v2550
        %v2552 = vpop.f32.mrb[0].mxu0
        %2553 = vdwg.mxu0
        %v2554 = vmax.f32 %v2540, 0.0
        %v2555 = vmax.f32 %v2543, 0.0
        %v2556 = vmax.f32 %v2548, 0.0
        %v2557 = vmax.f32 %v2551, 0.0
        %v2558 = vpack.c.bf16 %v2555, %v2554
        %v2559 = vpack.c.bf16 %v2557, %v2556
        %v2560 = vld [vmem:[%s9] sm:$0xf]
        %v2561 = vld [vmem:[%s9 + $0x4] sm:$0xf]
        %v2562 = vld [vmem:[%s9 + $0x8] sm:$0xf]
        %v2563 = vld [vmem:[%s9 + $0xc] sm:$0xf]
        %v2564 = vld [vmem:[%s9 + $0x10] sm:$0xf]
        %v2565 = vld [vmem:[%s9 + $0x14] sm:$0xf]
        %v2566 = vld [vmem:[%s9 + $0x18] sm:$0xf]
        %v2567 = vld [vmem:[%s9 + $0x1c] sm:$0x7]
        %v2576 = vunpack.c.l.b16 %v2560
        %v2577 = vunpack.c.l.b16 %v2561
        %v2578 = vunpack.c.l.b16 %v2562
        %v2579 = vunpack.c.l.b16 %v2563
        %v2580 = vunpack.c.l.b16 %v2564
        %v2581 = vunpack.c.l.b16 %v2565
        %v2582 = vunpack.c.l.b16 %v2566
        %v2583 = vunpack.c.l.b16 %v2567
        %v2584 = vpack.c.b16 %v2577, %v2576
        %v2585 = vpack.c.b16 %v2579, %v2578
        %v2586 = vpack.c.b16 %v2581, %v2580
        %v2587 = vpack.c.b16 %v2583, %v2582
        %vm2591 = vcmask 498688
        %v2593 = vsel %vm2591, %v2558, 0
        %v2596 = vsel %vm2591, %v2559, 0
        %v2599 = vand.u32 %v2587, %v2348
        %2601 = vmatprep.subr.bf16.mxu0 0
        %2602 = vmatpush1.bf16.msra.mxu0 %v2584
        %2603 = vmatprep.subr.bf16.mxu0 0
        %2604 = vmatpush1.bf16.msra.mxu0 %v2585
        %2605 = vmatprep.subr.bf16.mxu0 0
        %2606 = vmatpush1.bf16.msra.mxu0 %v2586
        %2607 = vmatprep.subr.bf16.mxu0 0
        %2608 = vmatpush1.bf16.msra.mxu0 %v2599
        %2609 = vmatprep.subr.bf16.mxu0 0
        %2610 = vmatpush1.bf16.msra.mxu0 0
        %2611 = vmatprep.subr.bf16.mxu0 0
        %2612 = vmatpush1.bf16.msra.mxu0 0
        %2613 = vmatprep.subr.bf16.mxu0 0
        %2614 = vmatpush1.bf16.msra.mxu0 0
        %2615 = vmatprep.subr.bf16.mxu0 0
        %2616 = vmatpush1.bf16.msra.mxu0 0
        %2617 = vmatprep.subr.bf16.mxu0 0
        %2618 = vmatpush1.bf16.msra.mxu0 0
        %2619 = vmatprep.subr.bf16.mxu0 0
        %2620 = vmatpush1.bf16.msra.mxu0 0
        %2621 = vmatprep.subr.bf16.mxu0 0
        %2622 = vmatpush1.bf16.msra.mxu0 0
        %2623 = vmatprep.subr.bf16.mxu0 0
        %2624 = vmatpush1.bf16.msra.mxu0 0
        %2625 = vmatprep.subr.bf16.mxu0 0
        %2626 = vmatpush1.bf16.msra.mxu0 0
        %2627 = vmatprep.subr.bf16.mxu0 0
        %2628 = vmatpush1.bf16.msra.mxu0 0
        %2629 = vmatprep.subr.bf16.mxu0 0
        %2630 = vmatpush1.bf16.msra.mxu0 0
        %2631 = vmatprep.subr.bf16.mxu0 0
        %2632 = vmatpush1.bf16.msra.mxu0 0
        %2633 = vmatprep.mubr.bf16.mxu0 0
        %2634 = vmatmul.mubr.bf16.gmra.mrb[0].mxu0 %v2593
        %v2635 = vpop.f32.mrb[0].mxu0
        %v2636 = vadd.f32 0.0, %v2635
        %v2637 = vpop.f32.mrb[0].mxu0
        %v2638 = vpop.f32.mrb[0].mxu0
        %v2639 = vadd.f32 0.0, %v2638
        %v2640 = vpop.f32.mrb[0].mxu0
        %2641 = vmatprep.mubr.bf16.mxu0 0
        %2642 = vmatmul.mubr.bf16.gmra.mrb[0].mxu0 %v2596
        %v2643 = vpop.f32.mrb[0].mxu0
        %v2644 = vadd.f32 0.0, %v2643
        %v2645 = vpop.f32.mrb[0].mxu0
        %v2646 = vpop.f32.mrb[0].mxu0
        %v2647 = vadd.f32 0.0, %v2646
        %v2648 = vpop.f32.mrb[0].mxu0
        %2649 = vdwg.mxu0
        %2654 = vrot.lane.b32.xlu0 %v2636, 112
        %v2655 = vpop.permute.xlu0 %2654
        %2656 = vrot.lane.b32.xlu0 %v2639, 112
        %v2657 = vpop.permute.xlu0 %2656
        %2658 = vrot.lane.b32.xlu0 %v2644, 112
        %v2659 = vpop.permute.xlu0 %2658
        %2660 = vrot.lane.b32.xlu0 %v2647, 112
        %v2661 = vpop.permute.xlu0 %2660
        %v2666 = vmax.f32 %v2636, %v2655
        %v2667 = vmax.f32 %v2639, %v2657
        %v2668 = vmax.f32 %v2644, %v2659
        %v2669 = vmax.f32 %v2647, %v2661
        %2674 = vrot.lane.b32.xlu0 %v2666, 96
        %v2675 = vpop.permute.xlu0 %2674
        %2676 = vrot.lane.b32.xlu0 %v2667, 96
        %v2677 = vpop.permute.xlu0 %2676
        %2678 = vrot.lane.b32.xlu0 %v2668, 96
        %v2679 = vpop.permute.xlu0 %2678
        %2680 = vrot.lane.b32.xlu0 %v2669, 96
        %v2681 = vpop.permute.xlu0 %2680
        %v2686 = vmax.f32 %v2666, %v2675
        %v2687 = vmax.f32 %v2667, %v2677
        %v2688 = vmax.f32 %v2668, %v2679
        %v2689 = vmax.f32 %v2669, %v2681
        %2694 = vrot.lane.b32.xlu0 %v2686, 127
        %v2695 = vpop.permute.xlu0 %2694
        %2696 = vrot.lane.b32.xlu0 %v2687, 127
        %v2697 = vpop.permute.xlu0 %2696
        %2698 = vrot.lane.b32.xlu0 %v2688, 127
        %v2699 = vpop.permute.xlu0 %2698
        %2700 = vrot.lane.b32.xlu0 %v2689, 127
        %v2701 = vpop.permute.xlu0 %2700
        %2706 = vrot.lane.b32.xlu0 %v2686, 126
        %v2707 = vpop.permute.xlu0 %2706
        %2708 = vrot.lane.b32.xlu0 %v2687, 126
        %v2709 = vpop.permute.xlu0 %2708
        %2710 = vrot.lane.b32.xlu0 %v2688, 126
        %v2711 = vpop.permute.xlu0 %2710
        %2712 = vrot.lane.b32.xlu0 %v2689, 126
        %v2713 = vpop.permute.xlu0 %2712
        %2718 = vrot.lane.b32.xlu0 %v2686, 125
        %v2719 = vpop.permute.xlu0 %2718
        %2720 = vrot.lane.b32.xlu0 %v2687, 125
        %v2721 = vpop.permute.xlu0 %2720
        %2722 = vrot.lane.b32.xlu0 %v2688, 125
        %v2723 = vpop.permute.xlu0 %2722
        %2724 = vrot.lane.b32.xlu0 %v2689, 125
        %v2725 = vpop.permute.xlu0 %2724
        %2730 = vrot.lane.b32.xlu0 %v2686, 124
        %v2731 = vpop.permute.xlu0 %2730
        %2732 = vrot.lane.b32.xlu0 %v2687, 124
        %v2733 = vpop.permute.xlu0 %2732
        %2734 = vrot.lane.b32.xlu0 %v2688, 124
        %v2735 = vpop.permute.xlu0 %2734
        %2736 = vrot.lane.b32.xlu0 %v2689, 124
        %v2737 = vpop.permute.xlu0 %2736
        %2742 = vrot.lane.b32.xlu0 %v2686, 123
        %v2743 = vpop.permute.xlu0 %2742
        %2744 = vrot.lane.b32.xlu0 %v2687, 123
        %v2745 = vpop.permute.xlu0 %2744
        %2746 = vrot.lane.b32.xlu0 %v2688, 123
        %v2747 = vpop.permute.xlu0 %2746
        %2748 = vrot.lane.b32.xlu0 %v2689, 123
        %v2749 = vpop.permute.xlu0 %2748
        %2754 = vrot.lane.b32.xlu0 %v2686, 122
        %v2755 = vpop.permute.xlu0 %2754
        %2756 = vrot.lane.b32.xlu0 %v2687, 122
        %v2757 = vpop.permute.xlu0 %2756
        %2758 = vrot.lane.b32.xlu0 %v2688, 122
        %v2759 = vpop.permute.xlu0 %2758
        %2760 = vrot.lane.b32.xlu0 %v2689, 122
        %v2761 = vpop.permute.xlu0 %2760
        %2766 = vrot.lane.b32.xlu0 %v2686, 121
        %v2767 = vpop.permute.xlu0 %2766
        %2768 = vrot.lane.b32.xlu0 %v2687, 121
        %v2769 = vpop.permute.xlu0 %2768
        %2770 = vrot.lane.b32.xlu0 %v2688, 121
        %v2771 = vpop.permute.xlu0 %2770
        %2772 = vrot.lane.b32.xlu0 %v2689, 121
        %v2773 = vpop.permute.xlu0 %2772
        %2778 = vrot.lane.b32.xlu0 %v2686, 120
        %v2779 = vpop.permute.xlu0 %2778
        %2780 = vrot.lane.b32.xlu0 %v2687, 120
        %v2781 = vpop.permute.xlu0 %2780
        %2782 = vrot.lane.b32.xlu0 %v2688, 120
        %v2783 = vpop.permute.xlu0 %2782
        %2784 = vrot.lane.b32.xlu0 %v2689, 120
        %v2785 = vpop.permute.xlu0 %2784
        %2790 = vrot.lane.b32.xlu0 %v2686, 119
        %v2791 = vpop.permute.xlu0 %2790
        %2792 = vrot.lane.b32.xlu0 %v2687, 119
        %v2793 = vpop.permute.xlu0 %2792
        %2794 = vrot.lane.b32.xlu0 %v2688, 119
        %v2795 = vpop.permute.xlu0 %2794
        %2796 = vrot.lane.b32.xlu0 %v2689, 119
        %v2797 = vpop.permute.xlu0 %2796
        %2802 = vrot.lane.b32.xlu0 %v2686, 118
        %v2803 = vpop.permute.xlu0 %2802
        %2804 = vrot.lane.b32.xlu0 %v2687, 118
        %v2805 = vpop.permute.xlu0 %2804
        %2806 = vrot.lane.b32.xlu0 %v2688, 118
        %v2807 = vpop.permute.xlu0 %2806
        %2808 = vrot.lane.b32.xlu0 %v2689, 118
        %v2809 = vpop.permute.xlu0 %2808
        %2814 = vrot.lane.b32.xlu0 %v2686, 117
        %v2815 = vpop.permute.xlu0 %2814
        %2816 = vrot.lane.b32.xlu0 %v2687, 117
        %v2817 = vpop.permute.xlu0 %2816
        %2818 = vrot.lane.b32.xlu0 %v2688, 117
        %v2819 = vpop.permute.xlu0 %2818
        %2820 = vrot.lane.b32.xlu0 %v2689, 117
        %v2821 = vpop.permute.xlu0 %2820
        %2826 = vrot.lane.b32.xlu0 %v2686, 116
        %v2827 = vpop.permute.xlu0 %2826
        %2828 = vrot.lane.b32.xlu0 %v2687, 116
        %v2829 = vpop.permute.xlu0 %2828
        %2830 = vrot.lane.b32.xlu0 %v2688, 116
        %v2831 = vpop.permute.xlu0 %2830
        %2832 = vrot.lane.b32.xlu0 %v2689, 116
        %v2833 = vpop.permute.xlu0 %2832
        %2838 = vrot.lane.b32.xlu0 %v2686, 115
        %v2839 = vpop.permute.xlu0 %2838
        %2840 = vrot.lane.b32.xlu0 %v2687, 115
        %v2841 = vpop.permute.xlu0 %2840
        %2842 = vrot.lane.b32.xlu0 %v2688, 115
        %v2843 = vpop.permute.xlu0 %2842
        %2844 = vrot.lane.b32.xlu0 %v2689, 115
        %v2845 = vpop.permute.xlu0 %2844
        %2850 = vrot.lane.b32.xlu0 %v2686, 114
        %v2851 = vpop.permute.xlu0 %2850
        %2852 = vrot.lane.b32.xlu0 %v2687, 114
        %v2853 = vpop.permute.xlu0 %2852
        %2854 = vrot.lane.b32.xlu0 %v2688, 114
        %v2855 = vpop.permute.xlu0 %2854
        %2856 = vrot.lane.b32.xlu0 %v2689, 114
        %v2857 = vpop.permute.xlu0 %2856
        %2862 = vrot.lane.b32.xlu0 %v2686, 113
        %v2863 = vpop.permute.xlu0 %2862
        %2864 = vrot.lane.b32.xlu0 %v2687, 113
        %v2865 = vpop.permute.xlu0 %2864
        %2866 = vrot.lane.b32.xlu0 %v2688, 113
        %v2867 = vpop.permute.xlu0 %2866
        %2868 = vrot.lane.b32.xlu0 %v2689, 113
        %v2869 = vpop.permute.xlu0 %2868
        %v2874 = vld [vmem:[%s10] sm:$0xff]
        %v2875 = vld [vmem:[%s10 + $0x8] sm:$0xff]
        %v2876 = vld [vmem:[%s10 + $0x10] sm:$0x11]
        %v2877 = vld [vmem:[%s10 + $0x18] sm:$0x11]
        %v2878 = vpack.c.bf16 %v2687, %v2686
        %v2879 = vpack.c.bf16 %v2689, %v2688
        %v2880 = vpack.c.bf16 %v2697, %v2695
        %v2881 = vpack.c.bf16 %v2701, %v2699
        %v2882 = vpack.c.bf16 %v2709, %v2707
        %v2883 = vpack.c.bf16 %v2713, %v2711
        %v2884 = vpack.c.bf16 %v2721, %v2719
        %v2885 = vpack.c.bf16 %v2725, %v2723
        %v2886 = vpack.c.bf16 %v2733, %v2731
        %v2887 = vpack.c.bf16 %v2737, %v2735
        %v2888 = vpack.c.bf16 %v2745, %v2743
        %v2889 = vpack.c.bf16 %v2749, %v2747
        %v2890 = vpack.c.bf16 %v2757, %v2755
        %v2891 = vpack.c.bf16 %v2761, %v2759
        %v2892 = vpack.c.bf16 %v2769, %v2767
        %v2893 = vpack.c.bf16 %v2773, %v2771
        %v2894 = vpack.c.bf16 %v2781, %v2779
        %v2895 = vpack.c.bf16 %v2785, %v2783
        %v2896 = vpack.c.bf16 %v2793, %v2791
        %v2897 = vpack.c.bf16 %v2797, %v2795
        %v2898 = vpack.c.bf16 %v2805, %v2803
        %v2899 = vpack.c.bf16 %v2809, %v2807
        %v2900 = vpack.c.bf16 %v2817, %v2815
        %v2901 = vpack.c.bf16 %v2821, %v2819
        %v2902 = vpack.c.bf16 %v2829, %v2827
        %v2903 = vpack.c.bf16 %v2833, %v2831
        %v2904 = vpack.c.bf16 %v2841, %v2839
        %v2905 = vpack.c.bf16 %v2845, %v2843
        %v2906 = vpack.c.bf16 %v2853, %v2851
        %v2907 = vpack.c.bf16 %v2857, %v2855
        %v2908 = vpack.c.bf16 %v2865, %v2863
        %v2909 = vpack.c.bf16 %v2869, %v2867
        %v2910 = vld [vmem:[%s11] sm:$0xff]
        %v2911 = vld [vmem:[%s11 + $0x8] sm:$0x3]
        %v2916 = vunpack.c.l.b16 %v2874
        %v2917 = vunpack.c.h.b16 %v2874
        %v2918 = vunpack.c.l.b16 %v2875
        %v2919 = vunpack.c.h.b16 %v2875
        %v2920 = vunpack.c.l.b16 %v2876
        %v2921 = vunpack.c.h.b16 %v2876
        %v2922 = vunpack.c.l.b16 %v2877
        %v2923 = vunpack.c.h.b16 %v2877
        %v2924 = vpack.c.b16 %v2920, %v2916
        %v2925 = vpack.c.b16 %v2921, %v2917
        %v2926 = vpack.c.b16 %v2922, %v2918
        %v2927 = vpack.c.b16 %v2923, %v2919
        %2932 = vmatprep.subr.bf16.mxu0 0
        %2933 = vmatpush1.bf16.msra.mxu0 %v2878
        %2934 = vmatprep.subr.bf16.mxu0 0
        %2935 = vmatpush1.bf16.msra.mxu0 %v2879
        %2936 = vmatprep.subr.bf16.mxu0 0
        %2937 = vmatpush1.bf16.msra.mxu0 %v2880
        %2938 = vmatprep.subr.bf16.mxu0 0
        %2939 = vmatpush1.bf16.msra.mxu0 %v2881
        %2940 = vmatprep.subr.bf16.mxu0 0
        %2941 = vmatpush1.bf16.msra.mxu0 %v2882
        %2942 = vmatprep.subr.bf16.mxu0 0
        %2943 = vmatpush1.bf16.msra.mxu0 %v2883
        %2944 = vmatprep.subr.bf16.mxu0 0
        %2945 = vmatpush1.bf16.msra.mxu0 %v2884
        %2946 = vmatprep.subr.bf16.mxu0 0
        %2947 = vmatpush1.bf16.msra.mxu0 %v2885
        %2948 = vmatprep.subr.bf16.mxu0 0
        %2949 = vmatpush1.bf16.msra.mxu0 %v2886
        %2950 = vmatprep.subr.bf16.mxu0 0
        %2951 = vmatpush1.bf16.msra.mxu0 %v2887
        %2952 = vmatprep.subr.bf16.mxu0 0
        %2953 = vmatpush1.bf16.msra.mxu0 %v2888
        %2954 = vmatprep.subr.bf16.mxu0 0
        %2955 = vmatpush1.bf16.msra.mxu0 %v2889
        %2956 = vmatprep.subr.bf16.mxu0 0
        %2957 = vmatpush1.bf16.msra.mxu0 %v2890
        %2958 = vmatprep.subr.bf16.mxu0 0
        %2959 = vmatpush1.bf16.msra.mxu0 %v2891
        %2960 = vmatprep.subr.bf16.mxu0 0
        %2961 = vmatpush1.bf16.msra.mxu0 %v2892
        %2962 = vmatprep.subr.bf16.mxu0 0
        %2963 = vmatpush1.bf16.msra.mxu0 %v2893
        %2964 = vmatprep.mubr.bf16.mxu0 %v2925
        %2965 = vmatmul.mubr.bf16.gmra.mrb[0].mxu0 %v2924
        %v2966 = vpop.f32.mrb[0].mxu0
        %v2967 = vadd.f32 %v2910, %v2966
        %v2968 = vpop.f32.mrb[0].mxu0
        %v2969 = vpop.f32.mrb[0].mxu0
        %v2970 = vadd.f32 %v2911, %v2969
        %v2971 = vpop.f32.mrb[0].mxu0
        %2972 = vdwg.mxu0
        %2973 = vmatprep.subr.bf16.mxu0 0
        %2974 = vmatpush1.bf16.msra.mxu0 %v2894
        %2975 = vmatprep.subr.bf16.mxu0 0
        %2976 = vmatpush1.bf16.msra.mxu0 %v2895
        %2977 = vmatprep.subr.bf16.mxu0 0
        %2978 = vmatpush1.bf16.msra.mxu0 %v2896
        %2979 = vmatprep.subr.bf16.mxu0 0
        %2980 = vmatpush1.bf16.msra.mxu0 %v2897
        %2981 = vmatprep.subr.bf16.mxu0 0
        %2982 = vmatpush1.bf16.msra.mxu0 %v2898
        %2983 = vmatprep.subr.bf16.mxu0 0
        %2984 = vmatpush1.bf16.msra.mxu0 %v2899
        %2985 = vmatprep.subr.bf16.mxu0 0
        %2986 = vmatpush1.bf16.msra.mxu0 %v2900
        %2987 = vmatprep.subr.bf16.mxu0 0
        %2988 = vmatpush1.bf16.msra.mxu0 %v2901
        %2989 = vmatprep.subr.bf16.mxu0 0
        %2990 = vmatpush1.bf16.msra.mxu0 %v2902
        %2991 = vmatprep.subr.bf16.mxu0 0
        %2992 = vmatpush1.bf16.msra.mxu0 %v2903
        %2993 = vmatprep.subr.bf16.mxu0 0
        %2994 = vmatpush1.bf16.msra.mxu0 %v2904
        %2995 = vmatprep.subr.bf16.mxu0 0
        %2996 = vmatpush1.bf16.msra.mxu0 %v2905
        %2997 = vmatprep.subr.bf16.mxu0 0
        %2998 = vmatpush1.bf16.msra.mxu0 %v2906
        %2999 = vmatprep.subr.bf16.mxu0 0
        %3000 = vmatpush1.bf16.msra.mxu0 %v2907
        %3001 = vmatprep.subr.bf16.mxu0 0
        %3002 = vmatpush1.bf16.msra.mxu0 %v2908
        %3003 = vmatprep.subr.bf16.mxu0 0
        %3004 = vmatpush1.bf16.msra.mxu0 %v2909
        %3005 = vmatprep.mubr.bf16.mxu0 %v2927
        %3006 = vmatmul.mubr.bf16.gmra.mrb[0].mxu0 %v2926
        %v3007 = vpop.f32.mrb[0].mxu0
        %v3008 = vadd.f32 %v2967, %v3007
        %v3009 = vpop.f32.mrb[0].mxu0
        %v3010 = vpop.f32.mrb[0].mxu0
        %v3011 = vadd.f32 %v2970, %v3010
        %v3012 = vpop.f32.mrb[0].mxu0
        %3013 = vdwg.mxu0
        %vm3014 = vcmask 7168
        %3015 = vst.msk [vmem:[%s425] sm:$0xff] %vm3014, %v3008
        %vm3016 = vcmask 1024
        %3017 = vst.msk [vmem:[%s425 + $0x8] sm:$0x3] %vm3016, %v3011
        %p3018 = scmp.lt.s32.totalorder %s24, 1
        %s3019 = scalar_select %p3018, %s24, 1
        %s3020 = smul.addr %s3019, 2
        %s3021 = smul.addr %s3020, 8
        %s3022 = scalar_lea.vmem %s12, %s3021
        // Predicated region
        $region73: #{mnist_net_forward.1} parent=67 // pred_check
          %p3023 = pneg %p299
        $region74: #{mnist_net_forward.1} parent=67 // pred_check_branch
          %3025 = sbr.rel (%p3023) target = $region76
        $region75: #{mnist_net_forward.1} parent=67 // pred_region
          _
        $region76: #{mnist_net_forward.1} parent=67 // pred_fallthru
          _
      $region68: #{mnist_net_forward.1} parent=5 // pred_fallthru
        _
      %p3026 = scmp.le.s32.totalorder 2, %s19
      // Predicated region
      $region77: #{mnist_net_forward.1} parent=5 // pred_check
        %p3027 = pneg %p3026
      $region78: #{mnist_net_forward.1} parent=5 // pred_check_branch
        %3029 = sbr.rel (%p3027) target = $region80
      $region79: #{mnist_net_forward.1} parent=5 // pred_region
        %s3030 = ssub.s32 %s19, 2
        // Predicated region
        $region81: #{mnist_net_forward.1} parent=79 // pred_check
          %p3031 = pneg %p305
        $region82: #{mnist_net_forward.1} parent=79 // pred_check_branch
          %3033 = sbr.rel (%p3031) target = $region84
        $region83: #{mnist_net_forward.1} parent=79 // pred_region
          %p3034 = scmp.lt.s32.totalorder %s25, 1
          %s3035 = scalar_select %p3034, %s25, 1
          %s3036 = smul.addr %s3035, 2
          %s3037 = smul.addr %s3036, 8
          %s3038 = scalar_lea.vmem %s12, %s3037
        $region84: #{mnist_net_forward.1} parent=79 // pred_fallthru
          _
      $region80: #{mnist_net_forward.1} parent=5 // pred_fallthru
        _
    $region6: #{mnist_net_forward.1} parent=1 // loop_footer
      %s23 = sadd.s32 1, %s19
    $region7: #{mnist_net_forward.1} parent=1 // loop_footer_branch
      %18 = sbr.rel target = $region3
    $region8: #{mnist_net_forward.1} parent=1 // loop_exit
      _
    %3039 = vsyncpa [#allocation3], 1
    %s3040 = scalar_lea.sflag [#allocation3], 1
    %3041 = vsyncpa %s3040, 1

</llo_original>
